<compile_context>
chip_gen: v5e
topology: v5e:2x2
jax: 0.10.0
libtpu: 0.0.40
codegen_flags: <defaults>
</compile_context>

<pallas_src>
import math
from functools import partial

import jax
import jax.numpy as jnp
import numpy as np
from jax import lax
from jax.experimental import pallas as pl
from jax.experimental.pallas import tpu as pltpu

_VMEM = pl.BlockSpec(memory_space=pltpu.MemorySpace.VMEM)


# ----------------------------------------------------------------------------
# Fused kernel
# ----------------------------------------------------------------------------

def cnn_fused_kernel(img_h, x_ref, m1_ref, b1_ref, m2_ref, b2_ref, s_ref,
                     w1_ref, b1fc_ref, w2_ref, b2fc_ref, o_ref):
    """Whole CNN forward.  Activation layout: rows=(b, y), lanes=(x, channel).

    Weight constants arrive as bf16; all accumulation / elementwise math is f32.
    """
    BH, _ = x_ref.shape                   # (B*H, W*Cin)
    H = img_h
    B = BH // H
    Hh = H // 2
    L2 = m2_ref.shape[1]                   # W*C2, lanes ordered (dx, px, c2)
    BHh = B * Hh

    def bands(a):
        # 3x3 conv (pad=1) banding via in-register row shifts + boundary masks.
        # Result lanes = the three ky-bands concatenated -> one big-K MXU dot.
        y = lax.broadcasted_iota(jnp.int32, a.shape, 0) % H
        up = jnp.where(y == 0, 0.0, pltpu.roll(a, 1, 0))            # row y-1 (ky=0)
        dn = jnp.where(y == H - 1, 0.0, pltpu.roll(a, BH - 1, 0))   # row y+1 (ky=2)
        return jnp.concatenate([up, a, dn], axis=1).astype(jnp.bfloat16)

    # ---- conv1 + bias + ReLU (single K=3*W*Cin matmul) -----------------------
    acc1 = jnp.dot(bands(x_ref[...]), m1_ref[...],
                   preferred_element_type=jnp.float32)
    act1 = jnp.maximum(acc1 + b1_ref[...], 0.0)                     # (B*H, W*C1)

    # ---- conv2 (bias/ReLU applied after the pool; both commute with max) -----
    acc2 = jnp.dot(bands(act1), m2_ref[...],
                   preferred_element_type=jnp.float32)              # (B*H, W*C2)

    # ---- fused 2x2 max-pool ---------------------------------------------------
    # vertical half: ONE 0/1 selection matmul; rows ordered (even|odd, py, b)
    sel = jnp.dot(s_ref[...], acc2, preferred_element_type=jnp.float32)
    vmax = jnp.maximum(sel[:BHh], sel[BHh:])                        # (B*Hh, W*C2)
    # horizontal half: conv2 lanes were emitted as (dx, px, c2) -> max of halves
    wmax = jnp.maximum(vmax[:, :L2 // 2], vmax[:, L2 // 2:])
    act2 = jnp.maximum(wmax + b2_ref[...], 0.0)       # (B*Hh, (W/2)*C2), rows (py, b)

    # ---- flatten: rows are (py, b), so each py block is a contiguous B-row
    # slice placed at a 128-lane-aligned offset.  The permutation matching
    # PyTorch's x.view(B, -1) is folded into w1 at prepare_params time.
    flat = jnp.concatenate([act2[p * B:(p + 1) * B, :] for p in range(Hh)],
                           axis=1)                                  # (B, fc_in)

    # ---- both fully-connected layers -----------------------------------------
    h = jnp.maximum(
        jnp.dot(flat.astype(jnp.bfloat16), w1_ref[...],
                preferred_element_type=jnp.float32) + b1fc_ref[...], 0.0)
    logits = jnp.dot(h.astype(jnp.bfloat16), w2_ref[...],
                     preferred_element_type=jnp.float32) + b2fc_ref[...]
    o_ref[...] = logits                    # lane-dense (num_classes padded to 128)


# ----------------------------------------------------------------------------
# Wrapper: one pallas_call, everything VMEM-resident
# ----------------------------------------------------------------------------
# TODO(synk): for large-batch throughput on v6e/v7x, add a grid over a batch
# axis (weights with constant index_map, "parallel" semantics); at B=2 a single
# gridless call is the latency-optimal shape.

@partial(jax.jit, static_argnames=("num_classes",))
def cnn_forward(x_nchw, kp, *, num_classes):
    B, Cin, H, W = x_nchw.shape
    # tiny one-op input prep: NCHW -> rows=(b, y), lanes=(x, cin); no padding
    # (the conv boundary rows are handled in-kernel by roll + row masks).
    x_rows = jnp.transpose(x_nchw, (0, 2, 3, 1)).reshape(B * H, W * Cin)
    padded_classes = kp["w2"].shape[-1]
    out = pl.pallas_call(
        partial(cnn_fused_kernel, H),
        out_shape=jax.ShapeDtypeStruct((B, padded_classes), jnp.float32),
        in_specs=[_VMEM] * 10,
        out_specs=_VMEM,
    )(x_rows, kp["m1"], kp["b1row"], kp["m2"], kp["b2row"], kp["sel"],
      kp["w1"], kp["b1fc"], kp["w2"], kp["b2fc"])
    return out[:, :num_classes]


# ----------------------------------------------------------------------------
# Parameter init (xavier_uniform * gain('relu'), zero bias) in PyTorch layouts
# ----------------------------------------------------------------------------

def _xavier_uniform(key, shape, fan_in, fan_out, gain):
    bound = gain * math.sqrt(6.0 / (fan_in + fan_out))
    return jax.random.uniform(key, shape, jnp.float32, -bound, bound)


def init_params(key, input_channels, channel_widths, image_width,
                hidden_width, num_classes):
    gain = math.sqrt(2.0)  # init_scale (=1) * calculate_gain('relu')
    cins = [input_channels] + list(channel_widths[:-1])
    convs = []
    for cin, cout in zip(cins, channel_widths):
        key, kw = jax.random.split(key)
        w = _xavier_uniform(kw, (cout, cin, 3, 3), cin * 9, cout * 9, gain)  # OIHW
        convs.append((w, jnp.zeros((cout,), jnp.float32)))
    fc_in = channel_widths[-1] * (image_width // 2 ** (len(channel_widths) - 1)) ** 2
    key, k1, k2 = jax.random.split(key, 3)
    return {
        "convs": convs,
        "fc_hidden_w": _xavier_uniform(k1, (hidden_width, fc_in), fc_in, hidden_width, gain),
        "fc_hidden_b": jnp.zeros((hidden_width,), jnp.float32),
        "fc_out_w": _xavier_uniform(k2, (num_classes, hidden_width),
                                    hidden_width, num_classes, gain),
        "fc_out_b": jnp.zeros((num_classes,), jnp.float32),
    }


# ----------------------------------------------------------------------------
# One-time (prep-time) rewrite of weights into kernel-ready constants
# ----------------------------------------------------------------------------

def _band_matrices(w_oihw, width, pool_cols):
    """M[ky, xin*Cin+ci, col(x,co)] = w[co, ci, ky, xin-x+1] (0 outside the band)."""
    cout, cin, kh, kw = w_oihw.shape
    wn = np.asarray(w_oihw, np.float32)
    m = np.zeros((kh, width * cin, width * cout), np.float32)
    for ky in range(kh):
        for x in range(width):
            if pool_cols:                       # column order (dx, px, co), x = 2*px+dx
                px, dx = x // 2, x % 2
                c0 = dx * (width // 2) * cout + px * cout
            else:                               # column order (x, co)
                c0 = x * cout
            for kx in range(kw):
                xin = x + kx - 1
                if 0 <= xin < width:
                    m[ky, xin * cin:(xin + 1) * cin, c0:c0 + cout] = wn[:, :, ky, kx].T
    return m


def prepare_params(raw, image_width, batch, num_classes):
    assert len(raw["convs"]) == 2, "fused kernel is specialized to two conv layers"
    (w1, b1), (w2, b2) = raw["convs"]
    W = H = image_width
    cin, c1, c2 = w1.shape[1], w1.shape[0], w2.shape[0]
    Hh = Wh = W // 2
    # lane/sublane invariants the in-kernel splits rely on
    assert (W * c1) % 128 == 0 and (Wh * c2) % 128 == 0 and H % 8 == 0

    bf16 = jnp.bfloat16
    # band matrices, ky blocks stacked along rows -> one big-K dot per conv
    m1 = _band_matrices(w1, W, pool_cols=False).reshape(3 * W * cin, W * c1)
    m2 = _band_matrices(w2, W, pool_cols=True).reshape(3 * W * c1, W * c2)
    b1row = np.tile(np.asarray(b1, np.float32), W).reshape(1, -1)
    b2row = np.tile(np.asarray(b2, np.float32), Wh).reshape(1, -1)

    # merged even/odd 0/1 selection for the vertical pool half; output rows are
    # ordered (even|odd half, py, b) so the flatten slices are contiguous.
    S = np.zeros((batch * H, batch * H), np.float32)
    for py in range(Hh):
        for b in range(batch):
            S[py * batch + b, b * H + 2 * py] = 1.0
            S[batch * Hh + py * batch + b, b * H + 2 * py + 1] = 1.0

    # fold the flatten permutation (kernel (py,px,c2) -> torch (c2,py,px)) into w1
    perm = np.empty(Hh * Wh * c2, np.int64)
    for py in range(Hh):
        for px in range(Wh):
            for co in range(c2):
                perm[py * (Wh * c2) + px * c2 + co] = co * (Hh * Wh) + py * Wh + px
    w1fc = np.asarray(raw["fc_hidden_w"], np.float32)[:, perm].T     # (fc_in, hidden)

    # pad the logits head to a lane-dense width (unmasked store; slice outside)
    ncp = ((num_classes + 127) // 128) * 128
    w2fc = np.zeros((raw["fc_out_w"].shape[1], ncp), np.float32)
    w2fc[:, :num_classes] = np.asarray(raw["fc_out_w"], np.float32).T
    b2fc = np.zeros((1, ncp), np.float32)
    b2fc[0, :num_classes] = np.asarray(raw["fc_out_b"], np.float32)

    return dict(
        m1=jnp.asarray(m1, bf16), b1row=jnp.asarray(b1row),
        m2=jnp.asarray(m2, bf16), b2row=jnp.asarray(b2row),
        sel=jnp.asarray(S),                                          # f32 0/1 (tiny)
        w1=jnp.asarray(w1fc, bf16),
        b1fc=jnp.asarray(np.asarray(raw["fc_hidden_b"], np.float32).reshape(1, -1)),
        w2=jnp.asarray(w2fc, bf16), b2fc=jnp.asarray(b2fc),
    )


# ----------------------------------------------------------------------------
# Pure-JAX reference (PyTorch semantics, batch_norm=False branch), using the
# same bf16-operand / f32-accumulate precision as the kernel's MXU dots.
# ----------------------------------------------------------------------------

def reference_forward(x_nchw, raw):
    bf16 = jnp.bfloat16
    (w1, b1), (w2, b2) = raw["convs"]
    dn = ("NCHW", "OIHW", "NCHW")
    y = lax.conv_general_dilated(x_nchw.astype(bf16), w1.astype(bf16), (1, 1),
                                 ((1, 1), (1, 1)), dimension_numbers=dn,
                                 preferred_element_type=jnp.float32)
    y = jnp.maximum(y + b1[None, :, None, None], 0.0)
    y = lax.conv_general_dilated(y.astype(bf16), w2.astype(bf16), (1, 1),
                                 ((1, 1), (1, 1)), dimension_numbers=dn,
                                 preferred_element_type=jnp.float32)
    y = jnp.maximum(y + b2[None, :, None, None], 0.0)
    B, C, Hc, Wc = y.shape
    y = y.reshape(B, C, Hc // 2, 2, Wc // 2, 2).max(axis=(3, 5))     # 2x2 max-pool
    flat = y.reshape(B, -1)
    h = jnp.dot(flat.astype(bf16), raw["fc_hidden_w"].T.astype(bf16),
                preferred_element_type=jnp.float32) + raw["fc_hidden_b"]
    h = jnp.maximum(h, 0.0)
    return jnp.dot(h.astype(bf16), raw["fc_out_w"].T.astype(bf16),
                   preferred_element_type=jnp.float32) + raw["fc_out_b"]


if __name__ == "__main__":
    batch = 2
    input_channels = 4
    channel_widths = [8, 16]
    image_width = 16
    hidden_width = 32
    num_classes = 10

    key = jax.random.PRNGKey(0)
    key, kx = jax.random.split(key)
    x = jax.random.normal(kx, (batch, input_channels, image_width, image_width),
                          jnp.float32)
    raw = init_params(key, input_channels, channel_widths, image_width,
                      hidden_width, num_classes)
    kp = prepare_params(raw, image_width, batch, num_classes)

    out = jax.block_until_ready(cnn_forward(x, kp, num_classes=num_classes))
    assert out.shape == (batch, num_classes), out.shape
    assert bool(jnp.all(jnp.isfinite(out)))

    ref = reference_forward(x, raw)
    max_err = float(jnp.max(jnp.abs(out - ref)))
    assert jnp.allclose(out, ref, rtol=1e-2, atol=1e-2), max_err
    print("KERNEL_OK")
</pallas_src>

<mosaic_0001>
module attributes {stable_mosaic.version = 11 : i64} {
  func.func @cnn_fused_kernel(%arg0: memref<32x64xf32, #tpu.memory_space<vmem>>, %arg1: memref<192x128xbf16, #tpu.memory_space<vmem>>, %arg2: memref<1x128xf32, #tpu.memory_space<vmem>>, %arg3: memref<384x256xbf16, #tpu.memory_space<vmem>>, %arg4: memref<1x128xf32, #tpu.memory_space<vmem>>, %arg5: memref<32x32xf32, #tpu.memory_space<vmem>>, %arg6: memref<1024x32xbf16, #tpu.memory_space<vmem>>, %arg7: memref<1x32xf32, #tpu.memory_space<vmem>>, %arg8: memref<32x128xbf16, #tpu.memory_space<vmem>>, %arg9: memref<1x128xf32, #tpu.memory_space<vmem>>, %arg10: memref<2x128xf32, #tpu.memory_space<vmem>>) attributes {dimension_semantics = [], scalar_prefetch = 0 : i64, scratch_operands = 0 : i64, tpu.core_type = #tpu.core_type<tc>} {
    %c0 = arith.constant 0 : index
    %c0_0 = arith.constant 0 : index
    %0 = vector.load %arg0[%c0, %c0_0] : memref<32x64xf32, #tpu.memory_space<vmem>>, vector<32x64xf32>
    %1 = tpu.iota {dimensions = array<i32: 0>} : vector<32x64xi32>
    %c16_i32 = arith.constant 16 : i32
    %c0_i32 = arith.constant 0 : i32
    %2 = arith.cmpi eq, %c16_i32, %c0_i32 : i32
    %c1_i32 = arith.constant 1 : i32
    %3 = arith.select %2, %c1_i32, %c16_i32 : i32
    %4 = vector.broadcast %3 : i32 to vector<32x64xi32>
    %5 = arith.remsi %1, %4 : vector<32x64xi32>
    %c0_i32_1 = arith.constant 0 : i32
    %6 = vector.broadcast %c0_i32_1 : i32 to vector<32x64xi32>
    %7 = arith.cmpi ne, %5, %6 : vector<32x64xi32>
    %c0_i32_2 = arith.constant 0 : i32
    %8 = vector.broadcast %c0_i32_2 : i32 to vector<32x64xi32>
    %9 = arith.cmpi slt, %5, %8 : vector<32x64xi32>
    %c0_i32_3 = arith.constant 0 : i32
    %10 = arith.cmpi slt, %3, %c0_i32_3 : i32
    %11 = vector.broadcast %10 : i1 to vector<32x64xi1>
    %12 = vector.broadcast %11 : vector<32x64xi1> to vector<32x64xi1>
    %13 = arith.xori %9, %12 : vector<32x64xi1>
    %14 = arith.andi %13, %7 : vector<32x64xi1>
    %15 = vector.broadcast %3 : i32 to vector<32x64xi32>
    %16 = arith.addi %5, %15 : vector<32x64xi32>
    %17 = arith.select %14, %16, %5 : vector<32x64xi1>, vector<32x64xi32>
    %c0_i32_4 = arith.constant 0 : i32
    %18 = vector.broadcast %c0_i32_4 : i32 to vector<32x64xi32>
    %19 = arith.cmpi eq, %17, %18 : vector<32x64xi32>
    %c1_i32_5 = arith.constant 1 : i32
    %20 = tpu.dynamic_rotate %0 by %c1_i32_5 dim 0 : vector<32x64xf32>, i32 -> vector<32x64xf32>
    %cst = arith.constant 0.000000e+00 : f32
    %21 = vector.broadcast %cst : f32 to vector<32x64xf32>
    %22 = arith.select %19, %21, %20 : vector<32x64xi1>, vector<32x64xf32>
    %c15_i32 = arith.constant 15 : i32
    %23 = vector.broadcast %c15_i32 : i32 to vector<32x64xi32>
    %24 = arith.cmpi eq, %17, %23 : vector<32x64xi32>
    %c31_i32 = arith.constant 31 : i32
    %25 = tpu.dynamic_rotate %0 by %c31_i32 dim 0 : vector<32x64xf32>, i32 -> vector<32x64xf32>
    %cst_6 = arith.constant 0.000000e+00 : f32
    %26 = vector.broadcast %cst_6 : f32 to vector<32x64xf32>
    %27 = arith.select %24, %26, %25 : vector<32x64xi1>, vector<32x64xf32>
    %28 = tpu.concatenate %22, %0, %27 in 1 : vector<32x64xf32>, vector<32x64xf32>, vector<32x64xf32> -> vector<32x192xf32>
    %29 = arith.truncf %28 : vector<32x192xf32> to vector<32x192xbf16>
    %c0_7 = arith.constant 0 : index
    %c0_8 = arith.constant 0 : index
    %30 = vector.load %arg1[%c0_7, %c0_8] : memref<192x128xbf16, #tpu.memory_space<vmem>>, vector<192x128xbf16>
    %cst_9 = arith.constant dense<0.000000e+00> : vector<32x128xf32>
    %31 = tpu.matmul %29, %30, %cst_9 {dimension_numbers = #tpu.dot_dimension_numbers<[1], [0], [0], [1], [0, 0, 1, 1], [], []>} : vector<32x192xbf16>, vector<192x128xbf16>, vector<32x128xf32> -> vector<32x128xf32>
    %c0_10 = arith.constant 0 : index
    %c0_11 = arith.constant 0 : index
    %32 = vector.load %arg2[%c0_10, %c0_11] : memref<1x128xf32, #tpu.memory_space<vmem>>, vector<1x128xf32>
    %33 = vector.broadcast %32 : vector<1x128xf32> to vector<32x128xf32>
    %34 = arith.addf %31, %33 : vector<32x128xf32>
    %cst_12 = arith.constant 0.000000e+00 : f32
    %35 = vector.broadcast %cst_12 : f32 to vector<32x128xf32>
    %36 = arith.maximumf %34, %35 : vector<32x128xf32>
    %37 = tpu.iota {dimensions = array<i32: 0>} : vector<32x128xi32>
    %c16_i32_13 = arith.constant 16 : i32
    %c0_i32_14 = arith.constant 0 : i32
    %38 = arith.cmpi eq, %c16_i32_13, %c0_i32_14 : i32
    %c1_i32_15 = arith.constant 1 : i32
    %39 = arith.select %38, %c1_i32_15, %c16_i32_13 : i32
    %40 = vector.broadcast %39 : i32 to vector<32x128xi32>
    %41 = arith.remsi %37, %40 : vector<32x128xi32>
    %c0_i32_16 = arith.constant 0 : i32
    %42 = vector.broadcast %c0_i32_16 : i32 to vector<32x128xi32>
    %43 = arith.cmpi ne, %41, %42 : vector<32x128xi32>
    %c0_i32_17 = arith.constant 0 : i32
    %44 = vector.broadcast %c0_i32_17 : i32 to vector<32x128xi32>
    %45 = arith.cmpi slt, %41, %44 : vector<32x128xi32>
    %c0_i32_18 = arith.constant 0 : i32
    %46 = arith.cmpi slt, %39, %c0_i32_18 : i32
    %47 = vector.broadcast %46 : i1 to vector<32x128xi1>
    %48 = vector.broadcast %47 : vector<32x128xi1> to vector<32x128xi1>
    %49 = arith.xori %45, %48 : vector<32x128xi1>
    %50 = arith.andi %49, %43 : vector<32x128xi1>
    %51 = vector.broadcast %39 : i32 to vector<32x128xi32>
    %52 = arith.addi %41, %51 : vector<32x128xi32>
    %53 = arith.select %50, %52, %41 : vector<32x128xi1>, vector<32x128xi32>
    %c0_i32_19 = arith.constant 0 : i32
    %54 = vector.broadcast %c0_i32_19 : i32 to vector<32x128xi32>
    %55 = arith.cmpi eq, %53, %54 : vector<32x128xi32>
    %c1_i32_20 = arith.constant 1 : i32
    %56 = tpu.dynamic_rotate %36 by %c1_i32_20 dim 0 : vector<32x128xf32>, i32 -> vector<32x128xf32>
    %cst_21 = arith.constant 0.000000e+00 : f32
    %57 = vector.broadcast %cst_21 : f32 to vector<32x128xf32>
    %58 = arith.select %55, %57, %56 : vector<32x128xi1>, vector<32x128xf32>
    %c15_i32_22 = arith.constant 15 : i32
    %59 = vector.broadcast %c15_i32_22 : i32 to vector<32x128xi32>
    %60 = arith.cmpi eq, %53, %59 : vector<32x128xi32>
    %c31_i32_23 = arith.constant 31 : i32
    %61 = tpu.dynamic_rotate %36 by %c31_i32_23 dim 0 : vector<32x128xf32>, i32 -> vector<32x128xf32>
    %cst_24 = arith.constant 0.000000e+00 : f32
    %62 = vector.broadcast %cst_24 : f32 to vector<32x128xf32>
    %63 = arith.select %60, %62, %61 : vector<32x128xi1>, vector<32x128xf32>
    %64 = tpu.concatenate %58, %36, %63 in 1 : vector<32x128xf32>, vector<32x128xf32>, vector<32x128xf32> -> vector<32x384xf32>
    %65 = arith.truncf %64 : vector<32x384xf32> to vector<32x384xbf16>
    %c0_25 = arith.constant 0 : index
    %c0_26 = arith.constant 0 : index
    %66 = vector.load %arg3[%c0_25, %c0_26] : memref<384x256xbf16, #tpu.memory_space<vmem>>, vector<384x256xbf16>
    %cst_27 = arith.constant dense<0.000000e+00> : vector<32x256xf32>
    %67 = tpu.matmul %65, %66, %cst_27 {dimension_numbers = #tpu.dot_dimension_numbers<[1], [0], [0], [1], [0, 0, 1, 1], [], []>} : vector<32x384xbf16>, vector<384x256xbf16>, vector<32x256xf32> -> vector<32x256xf32>
    %c0_28 = arith.constant 0 : index
    %c0_29 = arith.constant 0 : index
    %68 = vector.load %arg5[%c0_28, %c0_29] : memref<32x32xf32, #tpu.memory_space<vmem>>, vector<32x32xf32>
    %cst_30 = arith.constant dense<0.000000e+00> : vector<32x256xf32>
    %69 = tpu.matmul %68, %67, %cst_30 {dimension_numbers = #tpu.dot_dimension_numbers<[1], [0], [0], [1], [0, 0, 1, 1], [], []>} : vector<32x32xf32>, vector<32x256xf32>, vector<32x256xf32> -> vector<32x256xf32>
    %70 = vector.extract_strided_slice %69 {offsets = [0, 0], sizes = [16, 256], strides = [1, 1]} : vector<32x256xf32> to vector<16x256xf32>
    %71 = vector.extract_strided_slice %69 {offsets = [16, 0], sizes = [16, 256], strides = [1, 1]} : vector<32x256xf32> to vector<16x256xf32>
    %72 = arith.maximumf %70, %71 : vector<16x256xf32>
    %73 = vector.extract_strided_slice %72 {offsets = [0, 0], sizes = [16, 128], strides = [1, 1]} : vector<16x256xf32> to vector<16x128xf32>
    %74 = vector.extract_strided_slice %72 {offsets = [0, 128], sizes = [16, 128], strides = [1, 1]} : vector<16x256xf32> to vector<16x128xf32>
    %75 = arith.maximumf %73, %74 : vector<16x128xf32>
    %c0_31 = arith.constant 0 : index
    %c0_32 = arith.constant 0 : index
    %76 = vector.load %arg4[%c0_31, %c0_32] : memref<1x128xf32, #tpu.memory_space<vmem>>, vector<1x128xf32>
    %77 = vector.broadcast %76 : vector<1x128xf32> to vector<16x128xf32>
    %78 = arith.addf %75, %77 : vector<16x128xf32>
    %cst_33 = arith.constant 0.000000e+00 : f32
    %79 = vector.broadcast %cst_33 : f32 to vector<16x128xf32>
    %80 = arith.maximumf %78, %79 : vector<16x128xf32>
    %81 = vector.extract_strided_slice %80 {offsets = [0, 0], sizes = [2, 128], strides = [1, 1]} : vector<16x128xf32> to vector<2x128xf32>
    %82 = vector.extract_strided_slice %80 {offsets = [2, 0], sizes = [2, 128], strides = [1, 1]} : vector<16x128xf32> to vector<2x128xf32>
    %83 = vector.extract_strided_slice %80 {offsets = [4, 0], sizes = [2, 128], strides = [1, 1]} : vector<16x128xf32> to vector<2x128xf32>
    %84 = vector.extract_strided_slice %80 {offsets = [6, 0], sizes = [2, 128], strides = [1, 1]} : vector<16x128xf32> to vector<2x128xf32>
    %85 = vector.extract_strided_slice %80 {offsets = [8, 0], sizes = [2, 128], strides = [1, 1]} : vector<16x128xf32> to vector<2x128xf32>
    %86 = vector.extract_strided_slice %80 {offsets = [10, 0], sizes = [2, 128], strides = [1, 1]} : vector<16x128xf32> to vector<2x128xf32>
    %87 = vector.extract_strided_slice %80 {offsets = [12, 0], sizes = [2, 128], strides = [1, 1]} : vector<16x128xf32> to vector<2x128xf32>
    %88 = vector.extract_strided_slice %80 {offsets = [14, 0], sizes = [2, 128], strides = [1, 1]} : vector<16x128xf32> to vector<2x128xf32>
    %89 = tpu.concatenate %81, %82, %83, %84, %85, %86, %87, %88 in 1 : vector<2x128xf32>, vector<2x128xf32>, vector<2x128xf32>, vector<2x128xf32>, vector<2x128xf32>, vector<2x128xf32>, vector<2x128xf32>, vector<2x128xf32> -> vector<2x1024xf32>
    %90 = arith.truncf %89 : vector<2x1024xf32> to vector<2x1024xbf16>
    %c0_34 = arith.constant 0 : index
    %c0_35 = arith.constant 0 : index
    %91 = vector.load %arg6[%c0_34, %c0_35] : memref<1024x32xbf16, #tpu.memory_space<vmem>>, vector<1024x32xbf16>
    %cst_36 = arith.constant dense<0.000000e+00> : vector<2x32xf32>
    %92 = tpu.matmul %90, %91, %cst_36 {dimension_numbers = #tpu.dot_dimension_numbers<[1], [0], [0], [1], [0, 0, 1, 1], [], []>} : vector<2x1024xbf16>, vector<1024x32xbf16>, vector<2x32xf32> -> vector<2x32xf32>
    %c0_37 = arith.constant 0 : index
    %c0_38 = arith.constant 0 : index
    %93 = vector.load %arg7[%c0_37, %c0_38] : memref<1x32xf32, #tpu.memory_space<vmem>>, vector<1x32xf32>
    %94 = vector.broadcast %93 : vector<1x32xf32> to vector<2x32xf32>
    %95 = arith.addf %92, %94 : vector<2x32xf32>
    %cst_39 = arith.constant 0.000000e+00 : f32
    %96 = vector.broadcast %cst_39 : f32 to vector<2x32xf32>
    %97 = arith.maximumf %95, %96 : vector<2x32xf32>
    %98 = arith.truncf %97 : vector<2x32xf32> to vector<2x32xbf16>
    %c0_40 = arith.constant 0 : index
    %c0_41 = arith.constant 0 : index
    %99 = vector.load %arg8[%c0_40, %c0_41] : memref<32x128xbf16, #tpu.memory_space<vmem>>, vector<32x128xbf16>
    %cst_42 = arith.constant dense<0.000000e+00> : vector<2x128xf32>
    %100 = tpu.matmul %98, %99, %cst_42 {dimension_numbers = #tpu.dot_dimension_numbers<[1], [0], [0], [1], [0, 0, 1, 1], [], []>} : vector<2x32xbf16>, vector<32x128xbf16>, vector<2x128xf32> -> vector<2x128xf32>
    %c0_43 = arith.constant 0 : index
    %c0_44 = arith.constant 0 : index
    %101 = vector.load %arg9[%c0_43, %c0_44] : memref<1x128xf32, #tpu.memory_space<vmem>>, vector<1x128xf32>
    %102 = vector.broadcast %101 : vector<1x128xf32> to vector<2x128xf32>
    %103 = arith.addf %100, %102 : vector<2x128xf32>
    %c0_45 = arith.constant 0 : index
    %c0_46 = arith.constant 0 : index
    %104 = vector.load %arg10[%c0_45, %c0_46] : memref<2x128xf32, #tpu.memory_space<vmem>>, vector<2x128xf32>
    tpu.vector_store %arg10[%c0_45, %c0_46], %103 {strides = array<i32>} : memref<2x128xf32, #tpu.memory_space<vmem>>, vector<2x128xf32>,
    return
  }
}

</mosaic_0001>

<llo_original>
// kernel: cnn_forward.1
$region0: #{cnn_forward.1}
  #allocation0 [shape = 'u32[]', space=smem, size = 0x4, offset = 0x4, fixed_abs, tag = 'smem constant byte address 0x4 - core index']
  #allocation1 [shape = 'u32[72,128]{1,0:T(1,128)}', space=vmem, size = 0x9000, scoped, tag = 'internal scratch']
  %s0 = inlined_call_operand.vmem [shape: f32[32,64], index: 0, kind: input, shape index: {}]
  %s1 = inlined_call_operand.vmem [shape: bf16[192,128], index: 1, kind: input, shape index: {}]
  %s2 = inlined_call_operand.vmem [shape: f32[1,128], index: 2, kind: input, shape index: {}]
  %s3 = inlined_call_operand.vmem [shape: bf16[384,256], index: 3, kind: input, shape index: {}]
  %s4 = inlined_call_operand.vmem [shape: f32[1,128], index: 4, kind: input, shape index: {}]
  %s5 = inlined_call_operand.vmem [shape: f32[32,32], index: 5, kind: input, shape index: {}]
  %s6 = inlined_call_operand.vmem [shape: bf16[1024,32], index: 6, kind: input, shape index: {}]
  %s7 = inlined_call_operand.vmem [shape: f32[1,32], index: 7, kind: input, shape index: {}]
  %s8 = inlined_call_operand.vmem [shape: bf16[32,128], index: 8, kind: input, shape index: {}]
  %s9 = inlined_call_operand.vmem [shape: f32[1,128], index: 9, kind: input, shape index: {}]
  %s10 = inlined_call_operand.hbm [shape: f32[2,128], index: 10, kind: output, shape index: {}]
  %s11 = sld [smem:[#allocation0]]
  $region50: #{cnn_forward.1} parent=0
    _
  %s13 = ssub.s32 1, %s11
  %s14 = scalar_select 0, %s13, %s11
  $region1: #{cnn_forward.1} parent=0
    #allocation2 [shape = 'u8[1024]{0}', space=vmem, size = 0x400, scoped, tag = 'output window, operand 0, single buffered']
    #allocation3 [shape = 's32[1]{0}', space=sflag, size = 0x4, scoped, tag = 'scoped memory for cnn_forward.1']
    %15 = vsyncpa [#allocation3], 0
    // Predicated region
    $region2: #{cnn_forward.1} parent=1 // pred_check
      _
    $region3: #{cnn_forward.1} parent=1 // pred_check_branch
      %17 = sbr.rel (0) target = $region5
    $region4: #{cnn_forward.1} parent=1 // pred_region
      _
    $region5: #{cnn_forward.1} parent=1 // pred_fallthru
      _
    // Predicated region
    $region6: #{cnn_forward.1} parent=1 // pred_check
      _
    $region7: #{cnn_forward.1} parent=1 // pred_check_branch
      %19 = sbr.rel (0) target = $region9
    $region8: #{cnn_forward.1} parent=1 // pred_region
      _
    $region9: #{cnn_forward.1} parent=1 // pred_fallthru
      _
    // Predicated region
    $region10: #{cnn_forward.1} parent=1 // pred_check
      _
    $region11: #{cnn_forward.1} parent=1 // pred_check_branch
      %21 = sbr.rel (0) target = $region13
    $region12: #{cnn_forward.1} parent=1 // pred_region
      _
    $region13: #{cnn_forward.1} parent=1 // pred_fallthru
      _
    // Predicated region
    $region14: #{cnn_forward.1} parent=1 // pred_check
      _
    $region15: #{cnn_forward.1} parent=1 // pred_check_branch
      %23 = sbr.rel (0) target = $region17
    $region16: #{cnn_forward.1} parent=1 // pred_region
      _
    $region17: #{cnn_forward.1} parent=1 // pred_fallthru
      _
    // Predicated region
    $region18: #{cnn_forward.1} parent=1 // pred_check
      _
    $region19: #{cnn_forward.1} parent=1 // pred_check_branch
      %25 = sbr.rel (0) target = $region21
    $region20: #{cnn_forward.1} parent=1 // pred_region
      _
    $region21: #{cnn_forward.1} parent=1 // pred_fallthru
      _
    // Predicated region
    $region22: #{cnn_forward.1} parent=1 // pred_check
      _
    $region23: #{cnn_forward.1} parent=1 // pred_check_branch
      %27 = sbr.rel (0) target = $region25
    $region24: #{cnn_forward.1} parent=1 // pred_region
      _
    $region25: #{cnn_forward.1} parent=1 // pred_fallthru
      _
    // Predicated region
    $region26: #{cnn_forward.1} parent=1 // pred_check
      _
    $region27: #{cnn_forward.1} parent=1 // pred_check_branch
      %29 = sbr.rel (0) target = $region29
    $region28: #{cnn_forward.1} parent=1 // pred_region
      _
    $region29: #{cnn_forward.1} parent=1 // pred_fallthru
      _
    // Predicated region
    $region30: #{cnn_forward.1} parent=1 // pred_check
      _
    $region31: #{cnn_forward.1} parent=1 // pred_check_branch
      %31 = sbr.rel (0) target = $region33
    $region32: #{cnn_forward.1} parent=1 // pred_region
      _
    $region33: #{cnn_forward.1} parent=1 // pred_fallthru
      _
    // Predicated region
    $region34: #{cnn_forward.1} parent=1 // pred_check
      _
    $region35: #{cnn_forward.1} parent=1 // pred_check_branch
      %33 = sbr.rel (0) target = $region37
    $region36: #{cnn_forward.1} parent=1 // pred_region
      _
    $region37: #{cnn_forward.1} parent=1 // pred_fallthru
      _
    // Predicated region
    $region38: #{cnn_forward.1} parent=1 // pred_check
      _
    $region39: #{cnn_forward.1} parent=1 // pred_check_branch
      %35 = sbr.rel (0) target = $region41
    $region40: #{cnn_forward.1} parent=1 // pred_region
      _
    $region41: #{cnn_forward.1} parent=1 // pred_fallthru
      _
    %v37 = vld [vmem:[%s0] sm:$0xff]
    %v38 = vld [vmem:[%s0 + $0x8] sm:$0xff]
    %v39 = vld [vmem:[%s0 + $0x10] sm:$0xff]
    %v40 = vld [vmem:[%s0 + $0x18] sm:$0xff]
    %v41 = vlaneseq
    %v42 = vshrl.u32 %v41, 7
    %v43 = vadd.s32 %v42, 8
    %v44 = vadd.s32 %v42, 16
    %v45 = vadd.s32 %v42, 24
    %vm46 = vcmp.lt.s32.totalorder %v42, 0
    %v47 = vsub.s32 0, %v42
    %v48 = vsel %vm46, %v47, %v42
    %v49 = vshrl.u32 %v48, 4
    %v50 = vand.u32 %v48, 15
    %v51 = vsub.s32 0, %v50
    %v52 = vsel %vm46, %v51, %v50
    %vm53 = vcmp.lt.s32.totalorder %v43, 0
    %v54 = vsub.s32 0, %v43
    %v55 = vsel %vm53, %v54, %v43
    %v56 = vshrl.u32 %v55, 4
    %v57 = vand.u32 %v55, 15
    %v58 = vsub.s32 0, %v57
    %v59 = vsel %vm53, %v58, %v57
    %vm60 = vcmp.lt.s32.totalorder %v44, 0
    %v61 = vsub.s32 0, %v44
    %v62 = vsel %vm60, %v61, %v44
    %v63 = vshrl.u32 %v62, 4
    %v64 = vand.u32 %v62, 15
    %v65 = vsub.s32 0, %v64
    %v66 = vsel %vm60, %v65, %v64
    %vm67 = vcmp.lt.s32.totalorder %v45, 0
    %v68 = vsub.s32 0, %v45
    %v69 = vsel %vm67, %v68, %v45
    %v70 = vshrl.u32 %v69, 4
    %v71 = vand.u32 %v69, 15
    %v72 = vsub.s32 0, %v71
    %v73 = vsel %vm67, %v72, %v71
    %vm74 = vcmp.ne.s32.totalorder %v52, 0
    %vm75 = vcmp.ne.s32.totalorder %v59, 0
    %vm76 = vcmp.ne.s32.totalorder %v66, 0
    %vm77 = vcmp.ne.s32.totalorder %v73, 0
    %vm78 = vcmp.lt.s32.totalorder %v52, 0
    %vm79 = vcmp.lt.s32.totalorder %v59, 0
    %vm80 = vcmp.lt.s32.totalorder %v66, 0
    %vm81 = vcmp.lt.s32.totalorder %v73, 0
    %vm82 = vmand %vm78, %vm74
    %vm83 = vmand %vm79, %vm75
    %vm84 = vmand %vm80, %vm76
    %vm85 = vmand %vm81, %vm77
    %v86 = vadd.s32 %v52, 16
    %v87 = vadd.s32 %v59, 16
    %v88 = vadd.s32 %v66, 16
    %v89 = vadd.s32 %v73, 16
    %v90 = vsel %vm82, %v86, %v52
    %v91 = vsel %vm83, %v87, %v59
    %v92 = vsel %vm84, %v88, %v66
    %v93 = vsel %vm85, %v89, %v73
    %vm94 = vcmp.eq.s32.totalorder %v90, 0
    %vm95 = vcmp.eq.s32.totalorder %v91, 0
    %vm96 = vcmp.eq.s32.totalorder %v92, 0
    %vm97 = vcmp.eq.s32.totalorder %v93, 0
    %v98 = vrot.slane %v37, 7
    %v99 = vrot.slane %v38, 7
    %v100 = vrot.slane %v39, 7
    %v101 = vrot.slane %v40, 7
    %vm102 = vcmp.lt.s32.totalorder %v42, 1
    %v103 = vsel %vm102, %v100, %v101
    %v104 = vsel %vm102, %v99, %v100
    %v105 = vsel %vm102, %v98, %v99
    %v106 = vsel %vm102, %v101, %v98
    %v107 = vsel %vm94, 0.0, %v106
    %v108 = vsel %vm95, 0.0, %v105
    %v109 = vsel %vm96, 0.0, %v104
    %v110 = vsel %vm97, 0.0, %v103
    %vm111 = vcmp.eq.s32.totalorder %v90, 15
    %vm112 = vcmp.eq.s32.totalorder %v91, 15
    %vm113 = vcmp.eq.s32.totalorder %v92, 15
    %vm114 = vcmp.eq.s32.totalorder %v93, 15
    %v115 = vrot.slane %v37, 1
    %v116 = vrot.slane %v38, 1
    %v117 = vrot.slane %v39, 1
    %v118 = vrot.slane %v40, 1
    %vm119 = vcmp.lt.s32.totalorder %v42, 7
    %v120 = vsel %vm119, %v117, %v118
    %v121 = vsel %vm119, %v116, %v117
    %v122 = vsel %vm119, %v115, %v116
    %v123 = vsel %vm119, %v118, %v115
    %v124 = vsel %vm111, 0.0, %v122
    %v125 = vsel %vm112, 0.0, %v121
    %v126 = vsel %vm113, 0.0, %v120
    %v127 = vsel %vm114, 0.0, %v123
    %132 = vrot.lane.b32.xlu0 %v37, 64
    %v133 = vpop.permute.xlu0 %132
    %134 = vrot.lane.b32.xlu0 %v38, 64
    %v135 = vpop.permute.xlu0 %134
    %136 = vrot.lane.b32.xlu0 %v39, 64
    %v137 = vpop.permute.xlu0 %136
    %138 = vrot.lane.b32.xlu0 %v40, 64
    %v139 = vpop.permute.xlu0 %138
    %vm144 = vcmask 523264
    %v145 = vsel %vm144, %v107, %v133
    %v146 = vsel %vm144, %v108, %v135
    %v147 = vsel %vm144, %v109, %v137
    %v148 = vsel %vm144, %v110, %v139
    %v149 = vpack.c.bf16 %v146, %v145
    %v150 = vpack.c.bf16 %v125, %v124
    %v151 = vpack.c.bf16 %v148, %v147
    %v152 = vpack.c.bf16 %v127, %v126
    %v153 = vld [vmem:[%s1] sm:$0xf]
    %v154 = vld [vmem:[%s1 + $0x4] sm:$0xf]
    %v155 = vld [vmem:[%s1 + $0x8] sm:$0xf]
    %v156 = vld [vmem:[%s1 + $0xc] sm:$0xf]
    %v157 = vld [vmem:[%s1 + $0x10] sm:$0xf]
    %v158 = vld [vmem:[%s1 + $0x14] sm:$0xf]
    %v159 = vld [vmem:[%s1 + $0x18] sm:$0xf]
    %v160 = vld [vmem:[%s1 + $0x1c] sm:$0xf]
    %v161 = vld [vmem:[%s1 + $0x20] sm:$0xf]
    %v162 = vld [vmem:[%s1 + $0x24] sm:$0xf]
    %v163 = vld [vmem:[%s1 + $0x28] sm:$0xf]
    %v164 = vld [vmem:[%s1 + $0x2c] sm:$0xf]
    %v165 = vld [vmem:[%s1 + $0x30] sm:$0xf]
    %v166 = vld [vmem:[%s1 + $0x34] sm:$0xf]
    %v167 = vld [vmem:[%s1 + $0x38] sm:$0xf]
    %v168 = vld [vmem:[%s1 + $0x3c] sm:$0xf]
    %v169 = vld [vmem:[%s1 + $0x40] sm:$0xf]
    %v170 = vld [vmem:[%s1 + $0x44] sm:$0xf]
    %v171 = vld [vmem:[%s1 + $0x48] sm:$0xf]
    %v172 = vld [vmem:[%s1 + $0x4c] sm:$0xf]
    %v173 = vld [vmem:[%s1 + $0x50] sm:$0xf]
    %v174 = vld [vmem:[%s1 + $0x54] sm:$0xf]
    %v175 = vld [vmem:[%s1 + $0x58] sm:$0xf]
    %v176 = vld [vmem:[%s1 + $0x5c] sm:$0xf]
    %v177 = vld [vmem:[%s2] sm:$0x1]
    %v179 = vperm.slane %v177, 0
    %v205 = vunpack.c.l.b16 %v153
    %v206 = vunpack.c.l.b16 %v154
    %v207 = vunpack.c.l.b16 %v155
    %v208 = vunpack.c.l.b16 %v156
    %v209 = vunpack.c.l.b16 %v157
    %v210 = vunpack.c.l.b16 %v158
    %v211 = vunpack.c.l.b16 %v159
    %v212 = vunpack.c.l.b16 %v160
    %v213 = vunpack.c.l.b16 %v161
    %v214 = vunpack.c.l.b16 %v162
    %v215 = vunpack.c.l.b16 %v163
    %v216 = vunpack.c.l.b16 %v164
    %v217 = vunpack.c.l.b16 %v165
    %v218 = vunpack.c.l.b16 %v166
    %v219 = vunpack.c.l.b16 %v167
    %v220 = vunpack.c.l.b16 %v168
    %v221 = vunpack.c.l.b16 %v169
    %v222 = vunpack.c.l.b16 %v170
    %v223 = vunpack.c.l.b16 %v171
    %v224 = vunpack.c.l.b16 %v172
    %v225 = vunpack.c.l.b16 %v173
    %v226 = vunpack.c.l.b16 %v174
    %v227 = vunpack.c.l.b16 %v175
    %v228 = vunpack.c.l.b16 %v176
    %v229 = vpack.c.b16 %v206, %v205
    %v230 = vpack.c.b16 %v208, %v207
    %v231 = vpack.c.b16 %v210, %v209
    %v232 = vpack.c.b16 %v212, %v211
    %v233 = vpack.c.b16 %v214, %v213
    %v234 = vpack.c.b16 %v216, %v215
    %v235 = vpack.c.b16 %v218, %v217
    %v236 = vpack.c.b16 %v220, %v219
    %v237 = vpack.c.b16 %v222, %v221
    %v238 = vpack.c.b16 %v224, %v223
    %v239 = vpack.c.b16 %v226, %v225
    %v240 = vpack.c.b16 %v228, %v227
    %v254 = vsel %vm144, %v150, 0
    %v257 = vsel %vm144, %v152, 0
    %259 = vmatpush.bf16.msra.mxu0 %v236
    %260 = vmatpush.bf16.msra.mxu0 %v235
    %261 = vmatpush.bf16.msra.mxu0 %v234
    %262 = vmatpush.bf16.msra.mxu0 %v233
    %263 = vmatpush.bf16.msra.mxu0 %v232
    %264 = vmatpush.bf16.msra.mxu0 %v231
    %265 = vmatpush.bf16.msra.mxu0 %v230
    %266 = vmatpush.bf16.msra.mxu0 %v229
    %267 = vmatmul.bf16.gmra.mxu0 %v149
    %v268 = vpop.f32.mrf.mxu0
    %v269 = vadd.f32 %v179, %v268
    %v270 = vpop.f32.mrf.mxu0
    %v271 = vadd.f32 %v179, %v270
    %272 = vmatmul.bf16.gmra.mxu0 %v151
    %v273 = vpop.f32.mrf.mxu0
    %v274 = vadd.f32 %v179, %v273
    %v275 = vpop.f32.mrf.mxu0
    %v276 = vadd.f32 %v179, %v275
    %277 = vdwg.mxu0
    %278 = vmatpush.bf16.msra.mxu0 0
    %279 = vmatpush.bf16.msra.mxu0 0
    %280 = vmatpush.bf16.msra.mxu0 0
    %281 = vmatpush.bf16.msra.mxu0 0
    %282 = vmatpush.bf16.msra.mxu0 %v240
    %283 = vmatpush.bf16.msra.mxu0 %v239
    %284 = vmatpush.bf16.msra.mxu0 %v238
    %285 = vmatpush.bf16.msra.mxu0 %v237
    %286 = vmatmul.bf16.gmra.mxu0 %v254
    %v287 = vpop.f32.mrf.mxu0
    %v288 = vadd.f32 %v269, %v287
    %v289 = vpop.f32.mrf.mxu0
    %v290 = vadd.f32 %v271, %v289
    %291 = vmatmul.bf16.gmra.mxu0 %v257
    %v292 = vpop.f32.mrf.mxu0
    %v293 = vadd.f32 %v274, %v292
    %v294 = vpop.f32.mrf.mxu0
    %v295 = vadd.f32 %v276, %v294
    %296 = vdwg.mxu0
    %v297 = vmax.f32 %v288, 0.0
    %v298 = vmax.f32 %v290, 0.0
    %v299 = vmax.f32 %v293, 0.0
    %v300 = vmax.f32 %v295, 0.0
    %v301 = vrot.slane %v297, 7
    %v302 = vrot.slane %v298, 7
    %v303 = vrot.slane %v299, 7
    %v304 = vrot.slane %v300, 7
    %v305 = vsel %vm102, %v303, %v304
    %v306 = vsel %vm102, %v302, %v303
    %v307 = vsel %vm102, %v301, %v302
    %v308 = vsel %vm102, %v304, %v301
    %v309 = vsel %vm94, 0.0, %v308
    %v310 = vsel %vm95, 0.0, %v307
    %v311 = vsel %vm96, 0.0, %v306
    %v312 = vsel %vm97, 0.0, %v305
    %v313 = vrot.slane %v297, 1
    %v314 = vrot.slane %v298, 1
    %v315 = vrot.slane %v299, 1
    %v316 = vrot.slane %v300, 1
    %v317 = vsel %vm119, %v315, %v316
    %v318 = vsel %vm119, %v314, %v315
    %v319 = vsel %vm119, %v313, %v314
    %v320 = vsel %vm119, %v316, %v313
    %v321 = vsel %vm111, 0.0, %v319
    %v322 = vsel %vm112, 0.0, %v318
    %v323 = vsel %vm113, 0.0, %v317
    %v324 = vsel %vm114, 0.0, %v320
    %v325 = vpack.c.bf16 %v310, %v309
    %v326 = vpack.c.bf16 %v298, %v297
    %v327 = vpack.c.bf16 %v322, %v321
    %v328 = vpack.c.bf16 %v312, %v311
    %v329 = vpack.c.bf16 %v300, %v299
    %v330 = vpack.c.bf16 %v324, %v323
    %v331 = vld [vmem:[%s3] sm:$0xff]
    %v332 = vld [vmem:[%s3 + $0x8] sm:$0xff]
    %v333 = vld [vmem:[%s3 + $0x10] sm:$0xff]
    %v334 = vld [vmem:[%s3 + $0x18] sm:$0xff]
    %v335 = vld [vmem:[%s3 + $0x20] sm:$0xff]
    %v336 = vld [vmem:[%s3 + $0x28] sm:$0xff]
    %v337 = vld [vmem:[%s3 + $0x30] sm:$0xff]
    %v338 = vld [vmem:[%s3 + $0x38] sm:$0xff]
    %v339 = vld [vmem:[%s3 + $0x40] sm:$0xff]
    %v340 = vld [vmem:[%s3 + $0x48] sm:$0xff]
    %v341 = vld [vmem:[%s3 + $0x50] sm:$0xff]
    %v342 = vld [vmem:[%s3 + $0x58] sm:$0xff]
    %v343 = vld [vmem:[%s3 + $0x60] sm:$0xff]
    %v344 = vld [vmem:[%s3 + $0x68] sm:$0xff]
    %v345 = vld [vmem:[%s3 + $0x70] sm:$0xff]
    %v346 = vld [vmem:[%s3 + $0x78] sm:$0xff]
    %v347 = vld [vmem:[%s3 + $0x80] sm:$0xff]
    %v348 = vld [vmem:[%s3 + $0x88] sm:$0xff]
    %v349 = vld [vmem:[%s3 + $0x90] sm:$0xff]
    %v350 = vld [vmem:[%s3 + $0x98] sm:$0xff]
    %v351 = vld [vmem:[%s3 + $0xa0] sm:$0xff]
    %v352 = vld [vmem:[%s3 + $0xa8] sm:$0xff]
    %v353 = vld [vmem:[%s3 + $0xb0] sm:$0xff]
    %v354 = vld [vmem:[%s3 + $0xb8] sm:$0xff]
    %v355 = vld [vmem:[%s3 + $0xc0] sm:$0xff]
    %v356 = vld [vmem:[%s3 + $0xc8] sm:$0xff]
    %v357 = vld [vmem:[%s3 + $0xd0] sm:$0xff]
    %v358 = vld [vmem:[%s3 + $0xd8] sm:$0xff]
    %v359 = vld [vmem:[%s3 + $0xe0] sm:$0xff]
    %v360 = vld [vmem:[%s3 + $0xe8] sm:$0xff]
    %v361 = vld [vmem:[%s3 + $0xf0] sm:$0xff]
    %v362 = vld [vmem:[%s3 + $0xf8] sm:$0xff]
    %v363 = vld [vmem:[%s3 + $0x100] sm:$0xff]
    %v364 = vld [vmem:[%s3 + $0x108] sm:$0xff]
    %v365 = vld [vmem:[%s3 + $0x110] sm:$0xff]
    %v366 = vld [vmem:[%s3 + $0x118] sm:$0xff]
    %v367 = vld [vmem:[%s3 + $0x120] sm:$0xff]
    %v368 = vld [vmem:[%s3 + $0x128] sm:$0xff]
    %v369 = vld [vmem:[%s3 + $0x130] sm:$0xff]
    %v370 = vld [vmem:[%s3 + $0x138] sm:$0xff]
    %v371 = vld [vmem:[%s3 + $0x140] sm:$0xff]
    %v372 = vld [vmem:[%s3 + $0x148] sm:$0xff]
    %v373 = vld [vmem:[%s3 + $0x150] sm:$0xff]
    %v374 = vld [vmem:[%s3 + $0x158] sm:$0xff]
    %v375 = vld [vmem:[%s3 + $0x160] sm:$0xff]
    %v376 = vld [vmem:[%s3 + $0x168] sm:$0xff]
    %v377 = vld [vmem:[%s3 + $0x170] sm:$0xff]
    %v378 = vld [vmem:[%s3 + $0x178] sm:$0xff]
    %v427 = vunpack.c.l.b16 %v331
    %v428 = vunpack.c.h.b16 %v331
    %v429 = vunpack.c.l.b16 %v332
    %v430 = vunpack.c.h.b16 %v332
    %v431 = vunpack.c.l.b16 %v333
    %v432 = vunpack.c.h.b16 %v333
    %v433 = vunpack.c.l.b16 %v334
    %v434 = vunpack.c.h.b16 %v334
    %v435 = vunpack.c.l.b16 %v335
    %v436 = vunpack.c.h.b16 %v335
    %v437 = vunpack.c.l.b16 %v336
    %v438 = vunpack.c.h.b16 %v336
    %v439 = vunpack.c.l.b16 %v337
    %v440 = vunpack.c.h.b16 %v337
    %v441 = vunpack.c.l.b16 %v338
    %v442 = vunpack.c.h.b16 %v338
    %v443 = vunpack.c.l.b16 %v339
    %v444 = vunpack.c.h.b16 %v339
    %v445 = vunpack.c.l.b16 %v340
    %v446 = vunpack.c.h.b16 %v340
    %v447 = vunpack.c.l.b16 %v341
    %v448 = vunpack.c.h.b16 %v341
    %v449 = vunpack.c.l.b16 %v342
    %v450 = vunpack.c.h.b16 %v342
    %v451 = vunpack.c.l.b16 %v343
    %v452 = vunpack.c.h.b16 %v343
    %v453 = vunpack.c.l.b16 %v344
    %v454 = vunpack.c.h.b16 %v344
    %v455 = vunpack.c.l.b16 %v345
    %v456 = vunpack.c.h.b16 %v345
    %v457 = vunpack.c.l.b16 %v346
    %v458 = vunpack.c.h.b16 %v346
    %v459 = vunpack.c.l.b16 %v347
    %v460 = vunpack.c.h.b16 %v347
    %v461 = vunpack.c.l.b16 %v348
    %v462 = vunpack.c.h.b16 %v348
    %v463 = vunpack.c.l.b16 %v349
    %v464 = vunpack.c.h.b16 %v349
    %v465 = vunpack.c.l.b16 %v350
    %v466 = vunpack.c.h.b16 %v350
    %v467 = vunpack.c.l.b16 %v351
    %v468 = vunpack.c.h.b16 %v351
    %v469 = vunpack.c.l.b16 %v352
    %v470 = vunpack.c.h.b16 %v352
    %v471 = vunpack.c.l.b16 %v353
    %v472 = vunpack.c.h.b16 %v353
    %v473 = vunpack.c.l.b16 %v354
    %v474 = vunpack.c.h.b16 %v354
    %v475 = vunpack.c.l.b16 %v355
    %v476 = vunpack.c.h.b16 %v355
    %v477 = vunpack.c.l.b16 %v356
    %v478 = vunpack.c.h.b16 %v356
    %v479 = vunpack.c.l.b16 %v357
    %v480 = vunpack.c.h.b16 %v357
    %v481 = vunpack.c.l.b16 %v358
    %v482 = vunpack.c.h.b16 %v358
    %v483 = vunpack.c.l.b16 %v359
    %v484 = vunpack.c.h.b16 %v359
    %v485 = vunpack.c.l.b16 %v360
    %v486 = vunpack.c.h.b16 %v360
    %v487 = vunpack.c.l.b16 %v361
    %v488 = vunpack.c.h.b16 %v361
    %v489 = vunpack.c.l.b16 %v362
    %v490 = vunpack.c.h.b16 %v362
    %v491 = vunpack.c.l.b16 %v363
    %v492 = vunpack.c.h.b16 %v363
    %v493 = vunpack.c.l.b16 %v364
    %v494 = vunpack.c.h.b16 %v364
    %v495 = vunpack.c.l.b16 %v365
    %v496 = vunpack.c.h.b16 %v365
    %v497 = vunpack.c.l.b16 %v366
    %v498 = vunpack.c.h.b16 %v366
    %v499 = vunpack.c.l.b16 %v367
    %v500 = vunpack.c.h.b16 %v367
    %v501 = vunpack.c.l.b16 %v368
    %v502 = vunpack.c.h.b16 %v368
    %v503 = vunpack.c.l.b16 %v369
    %v504 = vunpack.c.h.b16 %v369
    %v505 = vunpack.c.l.b16 %v370
    %v506 = vunpack.c.h.b16 %v370
    %v507 = vunpack.c.l.b16 %v371
    %v508 = vunpack.c.h.b16 %v371
    %v509 = vunpack.c.l.b16 %v372
    %v510 = vunpack.c.h.b16 %v372
    %v511 = vunpack.c.l.b16 %v373
    %v512 = vunpack.c.h.b16 %v373
    %v513 = vunpack.c.l.b16 %v374
    %v514 = vunpack.c.h.b16 %v374
    %v515 = vunpack.c.l.b16 %v375
    %v516 = vunpack.c.h.b16 %v375
    %v517 = vunpack.c.l.b16 %v376
    %v518 = vunpack.c.h.b16 %v376
    %v519 = vunpack.c.l.b16 %v377
    %v520 = vunpack.c.h.b16 %v377
    %v521 = vunpack.c.l.b16 %v378
    %v522 = vunpack.c.h.b16 %v378
    %v523 = vpack.c.b16 %v429, %v427
    %v524 = vpack.c.b16 %v430, %v428
    %v525 = vpack.c.b16 %v433, %v431
    %v526 = vpack.c.b16 %v434, %v432
    %v527 = vpack.c.b16 %v437, %v435
    %v528 = vpack.c.b16 %v438, %v436
    %v529 = vpack.c.b16 %v441, %v439
    %v530 = vpack.c.b16 %v442, %v440
    %v531 = vpack.c.b16 %v445, %v443
    %v532 = vpack.c.b16 %v446, %v444
    %v533 = vpack.c.b16 %v449, %v447
    %v534 = vpack.c.b16 %v450, %v448
    %v535 = vpack.c.b16 %v453, %v451
    %v536 = vpack.c.b16 %v454, %v452
    %v537 = vpack.c.b16 %v457, %v455
    %v538 = vpack.c.b16 %v458, %v456
    %v539 = vpack.c.b16 %v461, %v459
    %v540 = vpack.c.b16 %v462, %v460
    %v541 = vpack.c.b16 %v465, %v463
    %v542 = vpack.c.b16 %v466, %v464
    %v543 = vpack.c.b16 %v469, %v467
    %v544 = vpack.c.b16 %v470, %v468
    %v545 = vpack.c.b16 %v473, %v471
    %v546 = vpack.c.b16 %v474, %v472
    %v547 = vpack.c.b16 %v477, %v475
    %v548 = vpack.c.b16 %v478, %v476
    %v549 = vpack.c.b16 %v481, %v479
    %v550 = vpack.c.b16 %v482, %v480
    %v551 = vpack.c.b16 %v485, %v483
    %v552 = vpack.c.b16 %v486, %v484
    %v553 = vpack.c.b16 %v489, %v487
    %v554 = vpack.c.b16 %v490, %v488
    %v555 = vpack.c.b16 %v493, %v491
    %v556 = vpack.c.b16 %v494, %v492
    %v557 = vpack.c.b16 %v497, %v495
    %v558 = vpack.c.b16 %v498, %v496
    %v559 = vpack.c.b16 %v501, %v499
    %v560 = vpack.c.b16 %v502, %v500
    %v561 = vpack.c.b16 %v505, %v503
    %v562 = vpack.c.b16 %v506, %v504
    %v563 = vpack.c.b16 %v509, %v507
    %v564 = vpack.c.b16 %v510, %v508
    %v565 = vpack.c.b16 %v513, %v511
    %v566 = vpack.c.b16 %v514, %v512
    %v567 = vpack.c.b16 %v517, %v515
    %v568 = vpack.c.b16 %v518, %v516
    %v569 = vpack.c.b16 %v521, %v519
    %v570 = vpack.c.b16 %v522, %v520
    %619 = vmatpush.bf16.msra.mxu0 %v537
    %620 = vmatpush.bf16.msra.mxu0 %v535
    %621 = vmatpush.bf16.msra.mxu0 %v533
    %622 = vmatpush.bf16.msra.mxu0 %v531
    %623 = vmatpush.bf16.msra.mxu0 %v529
    %624 = vmatpush.bf16.msra.mxu0 %v527
    %625 = vmatpush.bf16.msra.mxu0 %v525
    %626 = vmatpush.bf16.msra.mxu0 %v523
    %627 = vmatmul.bf16.gmra.mxu0 %v325
    %v628 = vpop.f32.mrf.mxu0
    %v629 = vadd.f32 0.0, %v628
    %v630 = vpop.f32.mrf.mxu0
    %v631 = vadd.f32 0.0, %v630
    %632 = vmatmul.bf16.gmra.mxu0 %v328
    %v633 = vpop.f32.mrf.mxu0
    %v634 = vadd.f32 0.0, %v633
    %v635 = vpop.f32.mrf.mxu0
    %v636 = vadd.f32 0.0, %v635
    %637 = vdwg.mxu0
    %638 = vmatpush.bf16.msra.mxu0 %v553
    %639 = vmatpush.bf16.msra.mxu0 %v551
    %640 = vmatpush.bf16.msra.mxu0 %v549
    %641 = vmatpush.bf16.msra.mxu0 %v547
    %642 = vmatpush.bf16.msra.mxu0 %v545
    %643 = vmatpush.bf16.msra.mxu0 %v543
    %644 = vmatpush.bf16.msra.mxu0 %v541
    %645 = vmatpush.bf16.msra.mxu0 %v539
    %646 = vmatmul.bf16.gmra.mxu0 %v326
    %v647 = vpop.f32.mrf.mxu0
    %v648 = vadd.f32 %v629, %v647
    %v649 = vpop.f32.mrf.mxu0
    %v650 = vadd.f32 %v631, %v649
    %651 = vmatmul.bf16.gmra.mxu0 %v329
    %v652 = vpop.f32.mrf.mxu0
    %v653 = vadd.f32 %v634, %v652
    %v654 = vpop.f32.mrf.mxu0
    %v655 = vadd.f32 %v636, %v654
    %656 = vdwg.mxu0
    %657 = vmatpush.bf16.msra.mxu0 %v569
    %658 = vmatpush.bf16.msra.mxu0 %v567
    %659 = vmatpush.bf16.msra.mxu0 %v565
    %660 = vmatpush.bf16.msra.mxu0 %v563
    %661 = vmatpush.bf16.msra.mxu0 %v561
    %662 = vmatpush.bf16.msra.mxu0 %v559
    %663 = vmatpush.bf16.msra.mxu0 %v557
    %664 = vmatpush.bf16.msra.mxu0 %v555
    %665 = vmatmul.bf16.gmra.mxu0 %v327
    %v666 = vpop.f32.mrf.mxu0
    %v667 = vadd.f32 %v648, %v666
    %v668 = vpop.f32.mrf.mxu0
    %v669 = vadd.f32 %v650, %v668
    %670 = vmatmul.bf16.gmra.mxu0 %v330
    %v671 = vpop.f32.mrf.mxu0
    %v672 = vadd.f32 %v653, %v671
    %v673 = vpop.f32.mrf.mxu0
    %v674 = vadd.f32 %v655, %v673
    %675 = vdwg.mxu0
    %676 = vmatpush.bf16.msra.mxu0 %v538
    %677 = vmatpush.bf16.msra.mxu0 %v536
    %678 = vmatpush.bf16.msra.mxu0 %v534
    %679 = vmatpush.bf16.msra.mxu0 %v532
    %680 = vmatpush.bf16.msra.mxu0 %v530
    %681 = vmatpush.bf16.msra.mxu0 %v528
    %682 = vmatpush.bf16.msra.mxu0 %v526
    %683 = vmatpush.bf16.msra.mxu0 %v524
    %684 = vmatmul.bf16.gmra.mxu0 %v325
    %v685 = vpop.f32.mrf.mxu0
    %v686 = vadd.f32 0.0, %v685
    %v687 = vpop.f32.mrf.mxu0
    %v688 = vadd.f32 0.0, %v687
    %689 = vmatmul.bf16.gmra.mxu0 %v328
    %v690 = vpop.f32.mrf.mxu0
    %v691 = vadd.f32 0.0, %v690
    %v692 = vpop.f32.mrf.mxu0
    %v693 = vadd.f32 0.0, %v692
    %694 = vdwg.mxu0
    %695 = vmatpush.bf16.msra.mxu0 %v554
    %696 = vmatpush.bf16.msra.mxu0 %v552
    %697 = vmatpush.bf16.msra.mxu0 %v550
    %698 = vmatpush.bf16.msra.mxu0 %v548
    %699 = vmatpush.bf16.msra.mxu0 %v546
    %700 = vmatpush.bf16.msra.mxu0 %v544
    %701 = vmatpush.bf16.msra.mxu0 %v542
    %702 = vmatpush.bf16.msra.mxu0 %v540
    %703 = vmatmul.bf16.gmra.mxu0 %v326
    %v704 = vpop.f32.mrf.mxu0
    %v705 = vadd.f32 %v686, %v704
    %v706 = vpop.f32.mrf.mxu0
    %v707 = vadd.f32 %v688, %v706
    %708 = vmatmul.bf16.gmra.mxu0 %v329
    %v709 = vpop.f32.mrf.mxu0
    %v710 = vadd.f32 %v691, %v709
    %v711 = vpop.f32.mrf.mxu0
    %v712 = vadd.f32 %v693, %v711
    %713 = vdwg.mxu0
    %714 = vmatpush.bf16.msra.mxu0 %v570
    %715 = vmatpush.bf16.msra.mxu0 %v568
    %716 = vmatpush.bf16.msra.mxu0 %v566
    %717 = vmatpush.bf16.msra.mxu0 %v564
    %718 = vmatpush.bf16.msra.mxu0 %v562
    %719 = vmatpush.bf16.msra.mxu0 %v560
    %720 = vmatpush.bf16.msra.mxu0 %v558
    %721 = vmatpush.bf16.msra.mxu0 %v556
    %722 = vmatmul.bf16.gmra.mxu0 %v327
    %v723 = vpop.f32.mrf.mxu0
    %v724 = vadd.f32 %v705, %v723
    %v725 = vpop.f32.mrf.mxu0
    %v726 = vadd.f32 %v707, %v725
    %727 = vmatmul.bf16.gmra.mxu0 %v330
    %v728 = vpop.f32.mrf.mxu0
    %v729 = vadd.f32 %v710, %v728
    %v730 = vpop.f32.mrf.mxu0
    %v731 = vadd.f32 %v712, %v730
    %732 = vdwg.mxu0
    %v733 = vld [vmem:[%s5] sm:$0xff]
    %v734 = vld [vmem:[%s5 + $0x8] sm:$0xff]
    %v735 = vld [vmem:[%s5 + $0x10] sm:$0xff]
    %v736 = vld [vmem:[%s5 + $0x18] sm:$0xff]
    %vm737 = vcmask 261120
    %v739 = vsel %vm737, %v733, 0
    %v742 = vsel %vm737, %v734, 0
    %v745 = vsel %vm737, %v735, 0
    %v748 = vsel %vm737, %v736, 0
    %750 = vmatpush.msra.mxu0 0.0
    %751 = vmatpush.msra.mxu0 0.0
    %752 = vmatpush.msra.mxu0 0.0
    %753 = vmatpush.msra.mxu0 0.0
    %754 = vmatpush.msra.mxu0 0.0
    %755 = vmatpush.msra.mxu0 0.0
    %756 = vmatpush.msra.mxu0 0.0
    %757 = vmatpush.msra.mxu0 0.0
    %758 = vmatpush.msra.mxu0 0.0
    %759 = vmatpush.msra.mxu0 0.0
    %760 = vmatpush.msra.mxu0 0.0
    %761 = vmatpush.msra.mxu0 0.0
    %762 = vmatpush.msra.mxu0 %v674
    %763 = vmatpush.msra.mxu0 %v672
    %764 = vmatpush.msra.mxu0 %v669
    %765 = vmatpush.msra.mxu0 %v667
    %766 = vmatmul.f32.gmra.mxu0 %v739
    %v767 = vpop.f32.mrf.mxu0
    %v768 = vadd.f32 0.0, %v767
    %769 = vmatmul.f32.gmra.mxu0 %v742
    %v770 = vpop.f32.mrf.mxu0
    %v771 = vadd.f32 0.0, %v770
    %772 = vmatmul.f32.gmra.mxu0 %v745
    %v773 = vpop.f32.mrf.mxu0
    %v774 = vadd.f32 0.0, %v773
    %775 = vmatmul.f32.gmra.mxu0 %v748
    %v776 = vpop.f32.mrf.mxu0
    %v777 = vadd.f32 0.0, %v776
    %778 = vdwg.mxu0
    %779 = vmatpush.msra.mxu0 0.0
    %780 = vmatpush.msra.mxu0 0.0
    %781 = vmatpush.msra.mxu0 0.0
    %782 = vmatpush.msra.mxu0 0.0
    %783 = vmatpush.msra.mxu0 0.0
    %784 = vmatpush.msra.mxu0 0.0
    %785 = vmatpush.msra.mxu0 0.0
    %786 = vmatpush.msra.mxu0 0.0
    %787 = vmatpush.msra.mxu0 0.0
    %788 = vmatpush.msra.mxu0 0.0
    %789 = vmatpush.msra.mxu0 0.0
    %790 = vmatpush.msra.mxu0 0.0
    %791 = vmatpush.msra.mxu0 %v731
    %792 = vmatpush.msra.mxu0 %v729
    %793 = vmatpush.msra.mxu0 %v726
    %794 = vmatpush.msra.mxu0 %v724
    %795 = vmatmul.f32.gmra.mxu0 %v739
    %v796 = vpop.f32.mrf.mxu0
    %v797 = vadd.f32 0.0, %v796
    %798 = vmatmul.f32.gmra.mxu0 %v742
    %v799 = vpop.f32.mrf.mxu0
    %v800 = vadd.f32 0.0, %v799
    %801 = vmatmul.f32.gmra.mxu0 %v745
    %v802 = vpop.f32.mrf.mxu0
    %v803 = vadd.f32 0.0, %v802
    %804 = vmatmul.f32.gmra.mxu0 %v748
    %v805 = vpop.f32.mrf.mxu0
    %v806 = vadd.f32 0.0, %v805
    %807 = vdwg.mxu0
    %v808 = vmax.f32 %v768, %v774
    %v809 = vmax.f32 %v797, %v803
    %v810 = vmax.f32 %v771, %v777
    %v811 = vmax.f32 %v800, %v806
    %v812 = vmax.f32 %v808, %v809
    %v813 = vmax.f32 %v810, %v811
    %v814 = vld [vmem:[%s4] sm:$0x1]
    %v816 = vperm.slane %v814, 0
    %v818 = vadd.f32 %v812, %v816
    %v819 = vadd.f32 %v813, %v816
    %v820 = vmax.f32 %v818, 0.0
    %v821 = vmax.f32 %v819, 0.0
    %v823 = vrot.slane %v820, 2
    %v825 = vrot.slane %v820, 4
    %v827 = vrot.slane %v820, 6
    %v830 = vrot.slane %v821, 2
    %v832 = vrot.slane %v821, 4
    %v834 = vrot.slane %v821, 6
    %v836 = vpack.c.bf16 %v820, %v820
    %v837 = vpack.c.bf16 %v823, %v823
    %v838 = vpack.c.bf16 %v825, %v825
    %v839 = vpack.c.bf16 %v827, %v827
    %v840 = vpack.c.bf16 %v821, %v821
    %v841 = vpack.c.bf16 %v830, %v830
    %v842 = vpack.c.bf16 %v832, %v832
    %v843 = vpack.c.bf16 %v834, %v834
    %v844 = vld [vmem:[%s6] sm:$0xf]
    %v845 = vld [vmem:[%s6 + $0x4] sm:$0xf]
    %v846 = vld [vmem:[%s6 + $0x8] sm:$0xf]
    %v847 = vld [vmem:[%s6 + $0xc] sm:$0xf]
    %v848 = vld [vmem:[%s6 + $0x10] sm:$0xf]
    %v849 = vld [vmem:[%s6 + $0x14] sm:$0xf]
    %v850 = vld [vmem:[%s6 + $0x18] sm:$0xf]
    %v851 = vld [vmem:[%s6 + $0x1c] sm:$0xf]
    %v852 = vld [vmem:[%s6 + $0x20] sm:$0xf]
    %v853 = vld [vmem:[%s6 + $0x24] sm:$0xf]
    %v854 = vld [vmem:[%s6 + $0x28] sm:$0xf]
    %v855 = vld [vmem:[%s6 + $0x2c] sm:$0xf]
    %v856 = vld [vmem:[%s6 + $0x30] sm:$0xf]
    %v857 = vld [vmem:[%s6 + $0x34] sm:$0xf]
    %v858 = vld [vmem:[%s6 + $0x38] sm:$0xf]
    %v859 = vld [vmem:[%s6 + $0x3c] sm:$0xf]
    %v860 = vld [vmem:[%s6 + $0x40] sm:$0xf]
    %v861 = vld [vmem:[%s6 + $0x44] sm:$0xf]
    %v862 = vld [vmem:[%s6 + $0x48] sm:$0xf]
    %v863 = vld [vmem:[%s6 + $0x4c] sm:$0xf]
    %v864 = vld [vmem:[%s6 + $0x50] sm:$0xf]
    %v865 = vld [vmem:[%s6 + $0x54] sm:$0xf]
    %v866 = vld [vmem:[%s6 + $0x58] sm:$0xf]
    %v867 = vld [vmem:[%s6 + $0x5c] sm:$0xf]
    %v868 = vld [vmem:[%s6 + $0x60] sm:$0xf]
    %v869 = vld [vmem:[%s6 + $0x64] sm:$0xf]
    %v870 = vld [vmem:[%s6 + $0x68] sm:$0xf]
    %v871 = vld [vmem:[%s6 + $0x6c] sm:$0xf]
    %v872 = vld [vmem:[%s6 + $0x70] sm:$0xf]
    %v873 = vld [vmem:[%s6 + $0x74] sm:$0xf]
    %v874 = vld [vmem:[%s6 + $0x78] sm:$0xf]
    %v875 = vld [vmem:[%s6 + $0x7c] sm:$0xf]
    %v876 = vld [vmem:[%s6 + $0x80] sm:$0xf]
    %v877 = vld [vmem:[%s6 + $0x84] sm:$0xf]
    %v878 = vld [vmem:[%s6 + $0x88] sm:$0xf]
    %v879 = vld [vmem:[%s6 + $0x8c] sm:$0xf]
    %v880 = vld [vmem:[%s6 + $0x90] sm:$0xf]
    %v881 = vld [vmem:[%s6 + $0x94] sm:$0xf]
    %v882 = vld [vmem:[%s6 + $0x98] sm:$0xf]
    %v883 = vld [vmem:[%s6 + $0x9c] sm:$0xf]
    %v884 = vld [vmem:[%s6 + $0xa0] sm:$0xf]
    %v885 = vld [vmem:[%s6 + $0xa4] sm:$0xf]
    %v886 = vld [vmem:[%s6 + $0xa8] sm:$0xf]
    %v887 = vld [vmem:[%s6 + $0xac] sm:$0xf]
    %v888 = vld [vmem:[%s6 + $0xb0] sm:$0xf]
    %v889 = vld [vmem:[%s6 + $0xb4] sm:$0xf]
    %v890 = vld [vmem:[%s6 + $0xb8] sm:$0xf]
    %v891 = vld [vmem:[%s6 + $0xbc] sm:$0xf]
    %v892 = vld [vmem:[%s6 + $0xc0] sm:$0xf]
    %v893 = vld [vmem:[%s6 + $0xc4] sm:$0xf]
    %v894 = vld [vmem:[%s6 + $0xc8] sm:$0xf]
    %v895 = vld [vmem:[%s6 + $0xcc] sm:$0xf]
    %v896 = vld [vmem:[%s6 + $0xd0] sm:$0xf]
    %v897 = vld [vmem:[%s6 + $0xd4] sm:$0xf]
    %v898 = vld [vmem:[%s6 + $0xd8] sm:$0xf]
    %v899 = vld [vmem:[%s6 + $0xdc] sm:$0xf]
    %v900 = vld [vmem:[%s6 + $0xe0] sm:$0xf]
    %v901 = vld [vmem:[%s6 + $0xe4] sm:$0xf]
    %v902 = vld [vmem:[%s6 + $0xe8] sm:$0xf]
    %v903 = vld [vmem:[%s6 + $0xec] sm:$0xf]
    %v904 = vld [vmem:[%s6 + $0xf0] sm:$0xf]
    %v905 = vld [vmem:[%s6 + $0xf4] sm:$0xf]
    %v906 = vld [vmem:[%s6 + $0xf8] sm:$0xf]
    %v907 = vld [vmem:[%s6 + $0xfc] sm:$0xf]
    %v908 = vld [vmem:[%s6 + $0x100] sm:$0xf]
    %v909 = vld [vmem:[%s6 + $0x104] sm:$0xf]
    %v910 = vld [vmem:[%s6 + $0x108] sm:$0xf]
    %v911 = vld [vmem:[%s6 + $0x10c] sm:$0xf]
    %v912 = vld [vmem:[%s6 + $0x110] sm:$0xf]
    %v913 = vld [vmem:[%s6 + $0x114] sm:$0xf]
    %v914 = vld [vmem:[%s6 + $0x118] sm:$0xf]
    %v915 = vld [vmem:[%s6 + $0x11c] sm:$0xf]
    %v916 = vld [vmem:[%s6 + $0x120] sm:$0xf]
    %v917 = vld [vmem:[%s6 + $0x124] sm:$0xf]
    %v918 = vld [vmem:[%s6 + $0x128] sm:$0xf]
    %v919 = vld [vmem:[%s6 + $0x12c] sm:$0xf]
    %v920 = vld [vmem:[%s6 + $0x130] sm:$0xf]
    %v921 = vld [vmem:[%s6 + $0x134] sm:$0xf]
    %v922 = vld [vmem:[%s6 + $0x138] sm:$0xf]
    %v923 = vld [vmem:[%s6 + $0x13c] sm:$0xf]
    %v924 = vld [vmem:[%s6 + $0x140] sm:$0xf]
    %v925 = vld [vmem:[%s6 + $0x144] sm:$0xf]
    %v926 = vld [vmem:[%s6 + $0x148] sm:$0xf]
    %v927 = vld [vmem:[%s6 + $0x14c] sm:$0xf]
    %v928 = vld [vmem:[%s6 + $0x150] sm:$0xf]
    %v929 = vld [vmem:[%s6 + $0x154] sm:$0xf]
    %v930 = vld [vmem:[%s6 + $0x158] sm:$0xf]
    %v931 = vld [vmem:[%s6 + $0x15c] sm:$0xf]
    %v932 = vld [vmem:[%s6 + $0x160] sm:$0xf]
    %v933 = vld [vmem:[%s6 + $0x164] sm:$0xf]
    %v934 = vld [vmem:[%s6 + $0x168] sm:$0xf]
    %v935 = vld [vmem:[%s6 + $0x16c] sm:$0xf]
    %v936 = vld [vmem:[%s6 + $0x170] sm:$0xf]
    %v937 = vld [vmem:[%s6 + $0x174] sm:$0xf]
    %v938 = vld [vmem:[%s6 + $0x178] sm:$0xf]
    %v939 = vld [vmem:[%s6 + $0x17c] sm:$0xf]
    %v940 = vld [vmem:[%s6 + $0x180] sm:$0xf]
    %v941 = vld [vmem:[%s6 + $0x184] sm:$0xf]
    %v942 = vld [vmem:[%s6 + $0x188] sm:$0xf]
    %v943 = vld [vmem:[%s6 + $0x18c] sm:$0xf]
    %v944 = vld [vmem:[%s6 + $0x190] sm:$0xf]
    %v945 = vld [vmem:[%s6 + $0x194] sm:$0xf]
    %v946 = vld [vmem:[%s6 + $0x198] sm:$0xf]
    %v947 = vld [vmem:[%s6 + $0x19c] sm:$0xf]
    %v948 = vld [vmem:[%s6 + $0x1a0] sm:$0xf]
    %v949 = vld [vmem:[%s6 + $0x1a4] sm:$0xf]
    %v950 = vld [vmem:[%s6 + $0x1a8] sm:$0xf]
    %v951 = vld [vmem:[%s6 + $0x1ac] sm:$0xf]
    %v952 = vld [vmem:[%s6 + $0x1b0] sm:$0xf]
    %v953 = vld [vmem:[%s6 + $0x1b4] sm:$0xf]
    %v954 = vld [vmem:[%s6 + $0x1b8] sm:$0xf]
    %v955 = vld [vmem:[%s6 + $0x1bc] sm:$0xf]
    %v956 = vld [vmem:[%s6 + $0x1c0] sm:$0xf]
    %v957 = vld [vmem:[%s6 + $0x1c4] sm:$0xf]
    %v958 = vld [vmem:[%s6 + $0x1c8] sm:$0xf]
    %v959 = vld [vmem:[%s6 + $0x1cc] sm:$0xf]
    %v960 = vld [vmem:[%s6 + $0x1d0] sm:$0xf]
    %v961 = vld [vmem:[%s6 + $0x1d4] sm:$0xf]
    %v962 = vld [vmem:[%s6 + $0x1d8] sm:$0xf]
    %v963 = vld [vmem:[%s6 + $0x1dc] sm:$0xf]
    %v964 = vld [vmem:[%s6 + $0x1e0] sm:$0xf]
    %v965 = vld [vmem:[%s6 + $0x1e4] sm:$0xf]
    %v966 = vld [vmem:[%s6 + $0x1e8] sm:$0xf]
    %v967 = vld [vmem:[%s6 + $0x1ec] sm:$0xf]
    %v968 = vld [vmem:[%s6 + $0x1f0] sm:$0xf]
    %v969 = vld [vmem:[%s6 + $0x1f4] sm:$0xf]
    %v970 = vld [vmem:[%s6 + $0x1f8] sm:$0xf]
    %v971 = vld [vmem:[%s6 + $0x1fc] sm:$0xf]
    %v972 = vld [vmem:[%s7] sm:$0x1]
    %v974 = vperm.slane %v972, 0
    %v1104 = vunpack.c.l.b16 %v844
    %v1105 = vunpack.c.l.b16 %v845
    %v1106 = vunpack.c.l.b16 %v846
    %v1107 = vunpack.c.l.b16 %v847
    %v1108 = vunpack.c.l.b16 %v848
    %v1109 = vunpack.c.l.b16 %v849
    %v1110 = vunpack.c.l.b16 %v850
    %v1111 = vunpack.c.l.b16 %v851
    %v1112 = vunpack.c.l.b16 %v852
    %v1113 = vunpack.c.l.b16 %v853
    %v1114 = vunpack.c.l.b16 %v854
    %v1115 = vunpack.c.l.b16 %v855
    %v1116 = vunpack.c.l.b16 %v856
    %v1117 = vunpack.c.l.b16 %v857
    %v1118 = vunpack.c.l.b16 %v858
    %v1119 = vunpack.c.l.b16 %v859
    %v1120 = vunpack.c.l.b16 %v860
    %v1121 = vunpack.c.l.b16 %v861
    %v1122 = vunpack.c.l.b16 %v862
    %v1123 = vunpack.c.l.b16 %v863
    %v1124 = vunpack.c.l.b16 %v864
    %v1125 = vunpack.c.l.b16 %v865
    %v1126 = vunpack.c.l.b16 %v866
    %v1127 = vunpack.c.l.b16 %v867
    %v1128 = vunpack.c.l.b16 %v868
    %v1129 = vunpack.c.l.b16 %v869
    %v1130 = vunpack.c.l.b16 %v870
    %v1131 = vunpack.c.l.b16 %v871
    %v1132 = vunpack.c.l.b16 %v872
    %v1133 = vunpack.c.l.b16 %v873
    %v1134 = vunpack.c.l.b16 %v874
    %v1135 = vunpack.c.l.b16 %v875
    %v1136 = vunpack.c.l.b16 %v876
    %v1137 = vunpack.c.l.b16 %v877
    %v1138 = vunpack.c.l.b16 %v878
    %v1139 = vunpack.c.l.b16 %v879
    %v1140 = vunpack.c.l.b16 %v880
    %v1141 = vunpack.c.l.b16 %v881
    %v1142 = vunpack.c.l.b16 %v882
    %v1143 = vunpack.c.l.b16 %v883
    %v1144 = vunpack.c.l.b16 %v884
    %v1145 = vunpack.c.l.b16 %v885
    %v1146 = vunpack.c.l.b16 %v886
    %v1147 = vunpack.c.l.b16 %v887
    %v1148 = vunpack.c.l.b16 %v888
    %v1149 = vunpack.c.l.b16 %v889
    %v1150 = vunpack.c.l.b16 %v890
    %v1151 = vunpack.c.l.b16 %v891
    %v1152 = vunpack.c.l.b16 %v892
    %v1153 = vunpack.c.l.b16 %v893
    %v1154 = vunpack.c.l.b16 %v894
    %v1155 = vunpack.c.l.b16 %v895
    %v1156 = vunpack.c.l.b16 %v896
    %v1157 = vunpack.c.l.b16 %v897
    %v1158 = vunpack.c.l.b16 %v898
    %v1159 = vunpack.c.l.b16 %v899
    %v1160 = vunpack.c.l.b16 %v900
    %v1161 = vunpack.c.l.b16 %v901
    %v1162 = vunpack.c.l.b16 %v902
    %v1163 = vunpack.c.l.b16 %v903
    %v1164 = vunpack.c.l.b16 %v904
    %v1165 = vunpack.c.l.b16 %v905
    %v1166 = vunpack.c.l.b16 %v906
    %v1167 = vunpack.c.l.b16 %v907
    %v1168 = vunpack.c.l.b16 %v908
    %v1169 = vunpack.c.l.b16 %v909
    %v1170 = vunpack.c.l.b16 %v910
    %v1171 = vunpack.c.l.b16 %v911
    %v1172 = vunpack.c.l.b16 %v912
    %v1173 = vunpack.c.l.b16 %v913
    %v1174 = vunpack.c.l.b16 %v914
    %v1175 = vunpack.c.l.b16 %v915
    %v1176 = vunpack.c.l.b16 %v916
    %v1177 = vunpack.c.l.b16 %v917
    %v1178 = vunpack.c.l.b16 %v918
    %v1179 = vunpack.c.l.b16 %v919
    %v1180 = vunpack.c.l.b16 %v920
    %v1181 = vunpack.c.l.b16 %v921
    %v1182 = vunpack.c.l.b16 %v922
    %v1183 = vunpack.c.l.b16 %v923
    %v1184 = vunpack.c.l.b16 %v924
    %v1185 = vunpack.c.l.b16 %v925
    %v1186 = vunpack.c.l.b16 %v926
    %v1187 = vunpack.c.l.b16 %v927
    %v1188 = vunpack.c.l.b16 %v928
    %v1189 = vunpack.c.l.b16 %v929
    %v1190 = vunpack.c.l.b16 %v930
    %v1191 = vunpack.c.l.b16 %v931
    %v1192 = vunpack.c.l.b16 %v932
    %v1193 = vunpack.c.l.b16 %v933
    %v1194 = vunpack.c.l.b16 %v934
    %v1195 = vunpack.c.l.b16 %v935
    %v1196 = vunpack.c.l.b16 %v936
    %v1197 = vunpack.c.l.b16 %v937
    %v1198 = vunpack.c.l.b16 %v938
    %v1199 = vunpack.c.l.b16 %v939
    %v1200 = vunpack.c.l.b16 %v940
    %v1201 = vunpack.c.l.b16 %v941
    %v1202 = vunpack.c.l.b16 %v942
    %v1203 = vunpack.c.l.b16 %v943
    %v1204 = vunpack.c.l.b16 %v944
    %v1205 = vunpack.c.l.b16 %v945
    %v1206 = vunpack.c.l.b16 %v946
    %v1207 = vunpack.c.l.b16 %v947
    %v1208 = vunpack.c.l.b16 %v948
    %v1209 = vunpack.c.l.b16 %v949
    %v1210 = vunpack.c.l.b16 %v950
    %v1211 = vunpack.c.l.b16 %v951
    %v1212 = vunpack.c.l.b16 %v952
    %v1213 = vunpack.c.l.b16 %v953
    %v1214 = vunpack.c.l.b16 %v954
    %v1215 = vunpack.c.l.b16 %v955
    %v1216 = vunpack.c.l.b16 %v956
    %v1217 = vunpack.c.l.b16 %v957
    %v1218 = vunpack.c.l.b16 %v958
    %v1219 = vunpack.c.l.b16 %v959
    %v1220 = vunpack.c.l.b16 %v960
    %v1221 = vunpack.c.l.b16 %v961
    %v1222 = vunpack.c.l.b16 %v962
    %v1223 = vunpack.c.l.b16 %v963
    %v1224 = vunpack.c.l.b16 %v964
    %v1225 = vunpack.c.l.b16 %v965
    %v1226 = vunpack.c.l.b16 %v966
    %v1227 = vunpack.c.l.b16 %v967
    %v1228 = vunpack.c.l.b16 %v968
    %v1229 = vunpack.c.l.b16 %v969
    %v1230 = vunpack.c.l.b16 %v970
    %v1231 = vunpack.c.l.b16 %v971
    %v1232 = vpack.c.b16 %v1105, %v1104
    %v1233 = vpack.c.b16 %v1107, %v1106
    %v1234 = vpack.c.b16 %v1109, %v1108
    %v1235 = vpack.c.b16 %v1111, %v1110
    %v1236 = vpack.c.b16 %v1113, %v1112
    %v1237 = vpack.c.b16 %v1115, %v1114
    %v1238 = vpack.c.b16 %v1117, %v1116
    %v1239 = vpack.c.b16 %v1119, %v1118
    %v1240 = vpack.c.b16 %v1121, %v1120
    %v1241 = vpack.c.b16 %v1123, %v1122
    %v1242 = vpack.c.b16 %v1125, %v1124
    %v1243 = vpack.c.b16 %v1127, %v1126
    %v1244 = vpack.c.b16 %v1129, %v1128
    %v1245 = vpack.c.b16 %v1131, %v1130
    %v1246 = vpack.c.b16 %v1133, %v1132
    %v1247 = vpack.c.b16 %v1135, %v1134
    %v1248 = vpack.c.b16 %v1137, %v1136
    %v1249 = vpack.c.b16 %v1139, %v1138
    %v1250 = vpack.c.b16 %v1141, %v1140
    %v1251 = vpack.c.b16 %v1143, %v1142
    %v1252 = vpack.c.b16 %v1145, %v1144
    %v1253 = vpack.c.b16 %v1147, %v1146
    %v1254 = vpack.c.b16 %v1149, %v1148
    %v1255 = vpack.c.b16 %v1151, %v1150
    %v1256 = vpack.c.b16 %v1153, %v1152
    %v1257 = vpack.c.b16 %v1155, %v1154
    %v1258 = vpack.c.b16 %v1157, %v1156
    %v1259 = vpack.c.b16 %v1159, %v1158
    %v1260 = vpack.c.b16 %v1161, %v1160
    %v1261 = vpack.c.b16 %v1163, %v1162
    %v1262 = vpack.c.b16 %v1165, %v1164
    %v1263 = vpack.c.b16 %v1167, %v1166
    %v1264 = vpack.c.b16 %v1169, %v1168
    %v1265 = vpack.c.b16 %v1171, %v1170
    %v1266 = vpack.c.b16 %v1173, %v1172
    %v1267 = vpack.c.b16 %v1175, %v1174
    %v1268 = vpack.c.b16 %v1177, %v1176
    %v1269 = vpack.c.b16 %v1179, %v1178
    %v1270 = vpack.c.b16 %v1181, %v1180
    %v1271 = vpack.c.b16 %v1183, %v1182
    %v1272 = vpack.c.b16 %v1185, %v1184
    %v1273 = vpack.c.b16 %v1187, %v1186
    %v1274 = vpack.c.b16 %v1189, %v1188
    %v1275 = vpack.c.b16 %v1191, %v1190
    %v1276 = vpack.c.b16 %v1193, %v1192
    %v1277 = vpack.c.b16 %v1195, %v1194
    %v1278 = vpack.c.b16 %v1197, %v1196
    %v1279 = vpack.c.b16 %v1199, %v1198
    %v1280 = vpack.c.b16 %v1201, %v1200
    %v1281 = vpack.c.b16 %v1203, %v1202
    %v1282 = vpack.c.b16 %v1205, %v1204
    %v1283 = vpack.c.b16 %v1207, %v1206
    %v1284 = vpack.c.b16 %v1209, %v1208
    %v1285 = vpack.c.b16 %v1211, %v1210
    %v1286 = vpack.c.b16 %v1213, %v1212
    %v1287 = vpack.c.b16 %v1215, %v1214
    %v1288 = vpack.c.b16 %v1217, %v1216
    %v1289 = vpack.c.b16 %v1219, %v1218
    %v1290 = vpack.c.b16 %v1221, %v1220
    %v1291 = vpack.c.b16 %v1223, %v1222
    %v1292 = vpack.c.b16 %v1225, %v1224
    %v1293 = vpack.c.b16 %v1227, %v1226
    %v1294 = vpack.c.b16 %v1229, %v1228
    %v1295 = vpack.c.b16 %v1231, %v1230
    %1360 = vmatpush.bf16.msra.mxu0 %v1239
    %1361 = vmatpush.bf16.msra.mxu0 %v1238
    %1362 = vmatpush.bf16.msra.mxu0 %v1237
    %1363 = vmatpush.bf16.msra.mxu0 %v1236
    %1364 = vmatpush.bf16.msra.mxu0 %v1235
    %1365 = vmatpush.bf16.msra.mxu0 %v1234
    %1366 = vmatpush.bf16.msra.mxu0 %v1233
    %1367 = vmatpush.bf16.msra.mxu0 %v1232
    %1368 = vmatmul.bf16.gmra.mxu0 %v836
    %v1369 = vpop.f32.mrf.mxu0
    %v1370 = vadd.f32 %v974, %v1369
    %v1371 = vpop.f32.mrf.mxu0
    %1372 = vdwg.mxu0
    %1373 = vmatpush.bf16.msra.mxu0 %v1247
    %1374 = vmatpush.bf16.msra.mxu0 %v1246
    %1375 = vmatpush.bf16.msra.mxu0 %v1245
    %1376 = vmatpush.bf16.msra.mxu0 %v1244
    %1377 = vmatpush.bf16.msra.mxu0 %v1243
    %1378 = vmatpush.bf16.msra.mxu0 %v1242
    %1379 = vmatpush.bf16.msra.mxu0 %v1241
    %1380 = vmatpush.bf16.msra.mxu0 %v1240
    %1381 = vmatmul.bf16.gmra.mxu0 %v837
    %v1382 = vpop.f32.mrf.mxu0
    %v1383 = vadd.f32 %v1370, %v1382
    %v1384 = vpop.f32.mrf.mxu0
    %1385 = vdwg.mxu0
    %1386 = vmatpush.bf16.msra.mxu0 %v1255
    %1387 = vmatpush.bf16.msra.mxu0 %v1254
    %1388 = vmatpush.bf16.msra.mxu0 %v1253
    %1389 = vmatpush.bf16.msra.mxu0 %v1252
    %1390 = vmatpush.bf16.msra.mxu0 %v1251
    %1391 = vmatpush.bf16.msra.mxu0 %v1250
    %1392 = vmatpush.bf16.msra.mxu0 %v1249
    %1393 = vmatpush.bf16.msra.mxu0 %v1248
    %1394 = vmatmul.bf16.gmra.mxu0 %v838
    %v1395 = vpop.f32.mrf.mxu0
    %v1396 = vadd.f32 %v1383, %v1395
    %v1397 = vpop.f32.mrf.mxu0
    %1398 = vdwg.mxu0
    %1399 = vmatpush.bf16.msra.mxu0 %v1263
    %1400 = vmatpush.bf16.msra.mxu0 %v1262
    %1401 = vmatpush.bf16.msra.mxu0 %v1261
    %1402 = vmatpush.bf16.msra.mxu0 %v1260
    %1403 = vmatpush.bf16.msra.mxu0 %v1259
    %1404 = vmatpush.bf16.msra.mxu0 %v1258
    %1405 = vmatpush.bf16.msra.mxu0 %v1257
    %1406 = vmatpush.bf16.msra.mxu0 %v1256
    %1407 = vmatmul.bf16.gmra.mxu0 %v839
    %v1408 = vpop.f32.mrf.mxu0
    %v1409 = vadd.f32 %v1396, %v1408
    %v1410 = vpop.f32.mrf.mxu0
    %1411 = vdwg.mxu0
    %1412 = vmatpush.bf16.msra.mxu0 %v1271
    %1413 = vmatpush.bf16.msra.mxu0 %v1270
    %1414 = vmatpush.bf16.msra.mxu0 %v1269
    %1415 = vmatpush.bf16.msra.mxu0 %v1268
    %1416 = vmatpush.bf16.msra.mxu0 %v1267
    %1417 = vmatpush.bf16.msra.mxu0 %v1266
    %1418 = vmatpush.bf16.msra.mxu0 %v1265
    %1419 = vmatpush.bf16.msra.mxu0 %v1264
    %1420 = vmatmul.bf16.gmra.mxu0 %v840
    %v1421 = vpop.f32.mrf.mxu0
    %v1422 = vadd.f32 %v1409, %v1421
    %v1423 = vpop.f32.mrf.mxu0
    %1424 = vdwg.mxu0
    %1425 = vmatpush.bf16.msra.mxu0 %v1279
    %1426 = vmatpush.bf16.msra.mxu0 %v1278
    %1427 = vmatpush.bf16.msra.mxu0 %v1277
    %1428 = vmatpush.bf16.msra.mxu0 %v1276
    %1429 = vmatpush.bf16.msra.mxu0 %v1275
    %1430 = vmatpush.bf16.msra.mxu0 %v1274
    %1431 = vmatpush.bf16.msra.mxu0 %v1273
    %1432 = vmatpush.bf16.msra.mxu0 %v1272
    %1433 = vmatmul.bf16.gmra.mxu0 %v841
    %v1434 = vpop.f32.mrf.mxu0
    %v1435 = vadd.f32 %v1422, %v1434
    %v1436 = vpop.f32.mrf.mxu0
    %1437 = vdwg.mxu0
    %1438 = vmatpush.bf16.msra.mxu0 %v1287
    %1439 = vmatpush.bf16.msra.mxu0 %v1286
    %1440 = vmatpush.bf16.msra.mxu0 %v1285
    %1441 = vmatpush.bf16.msra.mxu0 %v1284
    %1442 = vmatpush.bf16.msra.mxu0 %v1283
    %1443 = vmatpush.bf16.msra.mxu0 %v1282
    %1444 = vmatpush.bf16.msra.mxu0 %v1281
    %1445 = vmatpush.bf16.msra.mxu0 %v1280
    %1446 = vmatmul.bf16.gmra.mxu0 %v842
    %v1447 = vpop.f32.mrf.mxu0
    %v1448 = vadd.f32 %v1435, %v1447
    %v1449 = vpop.f32.mrf.mxu0
    %1450 = vdwg.mxu0
    %1451 = vmatpush.bf16.msra.mxu0 %v1295
    %1452 = vmatpush.bf16.msra.mxu0 %v1294
    %1453 = vmatpush.bf16.msra.mxu0 %v1293
    %1454 = vmatpush.bf16.msra.mxu0 %v1292
    %1455 = vmatpush.bf16.msra.mxu0 %v1291
    %1456 = vmatpush.bf16.msra.mxu0 %v1290
    %1457 = vmatpush.bf16.msra.mxu0 %v1289
    %1458 = vmatpush.bf16.msra.mxu0 %v1288
    %1459 = vmatmul.bf16.gmra.mxu0 %v843
    %v1460 = vpop.f32.mrf.mxu0
    %v1461 = vadd.f32 %v1448, %v1460
    %v1462 = vpop.f32.mrf.mxu0
    %1463 = vdwg.mxu0
    %v1464 = vmax.f32 %v1461, 0.0
    %v1465 = vpack.c.bf16 %v1464, %v1464
    %v1466 = vld [vmem:[%s8] sm:$0xf]
    %v1467 = vld [vmem:[%s8 + $0x4] sm:$0xf]
    %v1468 = vld [vmem:[%s8 + $0x8] sm:$0xf]
    %v1469 = vld [vmem:[%s8 + $0xc] sm:$0xf]
    %v1470 = vld [vmem:[%s9] sm:$0x1]
    %v1472 = vperm.slane %v1470, 0
    %v1478 = vunpack.c.l.b16 %v1466
    %v1479 = vunpack.c.l.b16 %v1467
    %v1480 = vunpack.c.l.b16 %v1468
    %v1481 = vunpack.c.l.b16 %v1469
    %v1482 = vpack.c.b16 %v1479, %v1478
    %v1483 = vpack.c.b16 %v1481, %v1480
    %v1487 = vsel %vm737, %v1465, 0
    %1489 = vmatpush.bf16.msra.mxu0 0
    %1490 = vmatpush.bf16.msra.mxu0 0
    %1491 = vmatpush.bf16.msra.mxu0 0
    %1492 = vmatpush.bf16.msra.mxu0 0
    %1493 = vmatpush.bf16.msra.mxu0 0
    %1494 = vmatpush.bf16.msra.mxu0 0
    %1495 = vmatpush.bf16.msra.mxu0 %v1483
    %1496 = vmatpush.bf16.msra.mxu0 %v1482
    %1497 = vmatmul.bf16.gmra.mxu0 %v1487
    %v1498 = vpop.f32.mrf.mxu0
    %v1499 = vadd.f32 %v1472, %v1498
    %v1500 = vpop.f32.mrf.mxu0
    %1501 = vdwg.mxu0
    %1502 = vst [vmem:[#allocation2] sm:$0x3] %v1499
    // Predicated region
    $region42: #{cnn_forward.1} parent=1 // pred_check
      _
    $region43: #{cnn_forward.1} parent=1 // pred_check_branch
      %1504 = sbr.rel (0) target = $region45
    $region44: #{cnn_forward.1} parent=1 // pred_region
      %1506 = vsyncadd [#allocation3], 0
      %s1508 = sshll.u32 [#allocation2], 4
      %s1509 = int_to_ptr.vmem [resolvable:$true] %s1508
      %s1510 = sshll.u32 %s10, 4
      %s1511 = int_to_ptr.hbm [resolvable:$true] %s1510
      %1513 = dma.vmem_to_hbm [thread:$0]  %s1509, 32, %s1511, [#allocation3]
    $region45: #{cnn_forward.1} parent=1 // pred_fallthru
      _
    // Predicated region
    $region46: #{cnn_forward.1} parent=1 // pred_check
      _
    $region47: #{cnn_forward.1} parent=1 // pred_check_branch
      %1515 = sbr.rel (0) target = $region49
    $region48: #{cnn_forward.1} parent=1 // pred_region
      %1517 = dma.done [#allocation3], 32
    $region49: #{cnn_forward.1} parent=1 // pred_fallthru
      _
    %1518 = vsyncpa [#allocation3], 1

</llo_original>
